<compile_context>
chip_gen: v5e
topology: v5e:2x2
jax: 0.10.0
libtpu: 0.0.40
codegen_flags: <defaults>
</compile_context>

<pallas_src>
import math
import functools

import jax
import jax.numpy as jnp
from jax.experimental import pallas as pl
from jax.experimental.pallas import tpu as pltpu


# ----------------------------- in-kernel helpers -----------------------------

def _layernorm(v, w, b, eps=1e-5):
    # v: (M, D) f32, w/b: (1, D) f32  (keep elementwise math in f32)
    mu = jnp.mean(v, axis=-1, keepdims=True)
    var = jnp.mean((v - mu) ** 2, axis=-1, keepdims=True)
    return (v - mu) * jax.lax.rsqrt(var + eps) * w + b


# ------------------------------- fused kernel --------------------------------

def _encoder_kernel(n_head,
                    x_ref, pe_ref, nw_ref, nb_ref,
                    ln1w_ref, ln1b_ref,
                    wq_ref, bq_ref, wk_ref, bk_ref, wv_ref, bv_ref,
                    wo_ref, bo_ref,
                    ln2w_ref, ln2b_ref,
                    w1_ref, b1_ref, w2_ref, b2_ref,
                    out_ref, act_ref):
    """One (batch_block, layer) grid step.

    x_ref/out_ref: (Bt, T, D) f32.   act_ref: VMEM accumulator (Bt, T, D) f32,
    resident across the layer grid axis.  Weights are bf16, pre-transposed to
    (in_features, out_features); biases / LN params are f32.
    """
    l = pl.program_id(1)
    n_layers = pl.num_programs(1)
    Bt, T, D = act_ref.shape
    Dh = D // n_head
    scale = 1.0 / math.sqrt(Dh)

    # ---- first layer: load activation block and add positional encoding ----
    @pl.when(l == 0)
    def _init():
        act_ref[...] = x_ref[...] + pe_ref[...][None, :, :]

    x3 = act_ref[...]                              # (Bt, T, D) f32
    x2 = x3.reshape(Bt * T, D)                     # leading-dim reshape (free)

    # ---- self-attention branch: x + Attn(LN1(x)) ----
    h = _layernorm(x2, ln1w_ref[...], ln1b_ref[...])
    hb = h.astype(jnp.bfloat16)
    q = jnp.dot(hb, wq_ref[...], preferred_element_type=jnp.float32) + bq_ref[...]
    k = jnp.dot(hb, wk_ref[...], preferred_element_type=jnp.float32) + bk_ref[...]
    v = jnp.dot(hb, wv_ref[...], preferred_element_type=jnp.float32) + bv_ref[...]
    q = q * scale                                  # fold 1/sqrt(Dh) once into q
    q3 = q.reshape(Bt, T, D).astype(jnp.bfloat16)
    k3 = k.reshape(Bt, T, D).astype(jnp.bfloat16)
    v3 = v.reshape(Bt, T, D).astype(jnp.bfloat16)

    head_outs = []
    for hh in range(n_head):                       # static unroll over heads
        sl = slice(hh * Dh, (hh + 1) * Dh)
        qh, kh, vh = q3[:, :, sl], k3[:, :, sl], v3[:, :, sl]   # (Bt, T, Dh)
        s = jnp.einsum('btd,bsd->bts', qh, kh,
                       preferred_element_type=jnp.float32)      # (Bt, T, T) f32
        s = s - jnp.max(s, axis=-1, keepdims=True)
        p = jnp.exp(s)
        p = p * pl.reciprocal(jnp.sum(p, axis=-1, keepdims=True), approx=True)
        head_outs.append(jnp.einsum('bts,bsd->btd', p.astype(jnp.bfloat16), vh,
                                    preferred_element_type=jnp.float32))
    ctx = jnp.concatenate(head_outs, axis=-1).reshape(Bt * T, D)
    attn = jnp.dot(ctx.astype(jnp.bfloat16), wo_ref[...],
                   preferred_element_type=jnp.float32) + bo_ref[...]
    # dropout: identity in eval mode
    x2 = x2 + attn

    # ---- feed-forward branch: x + FFN(LN2(x)) ----
    h2 = _layernorm(x2, ln2w_ref[...], ln2b_ref[...])
    ff = jnp.dot(h2.astype(jnp.bfloat16), w1_ref[...],
                 preferred_element_type=jnp.float32) + b1_ref[...]
    ff = jnp.maximum(ff, 0.0)
    ff = jnp.dot(ff.astype(jnp.bfloat16), w2_ref[...],
                 preferred_element_type=jnp.float32) + b2_ref[...]
    x2 = x2 + ff

    act_ref[...] = x2.reshape(Bt, T, D)            # carry to next layer

    # ---- last layer: fused final encoder LayerNorm + writeback ----
    @pl.when(l == n_layers - 1)
    def _final():
        y = _layernorm(x2, nw_ref[...], nb_ref[...])
        out_ref[...] = y.reshape(Bt, T, D)


# ------------------------------ Pallas wrapper --------------------------------

def _choose_batch_block(B, T):
    """Batch elements fused per grid block.

    Prefer >=2 batch blocks (so v7x's two TensorCores both get work) as long
    as the fused M dimension (Bt*T) stays >= 128 rows; otherwise prefer the
    biggest M tile (up to ~512 rows).
    """
    for bt in range(B, 0, -1):
        if B % bt == 0 and bt * T >= 128 and B // bt >= 2:
            return bt
    for bt in range(B, 0, -1):
        if B % bt == 0 and bt * T <= 512:
            return bt
    return 1


def _vmem_limit_bytes(Bt, T, D, d_ff):
    f32, bf16 = 4, 2
    act = Bt * T * D * f32
    weights = (4 * D * D + 2 * D * d_ff) * bf16
    small = (T * D + 14 * D + d_ff) * f32
    interm = Bt * T * (4 * D + d_ff) * f32 + 2 * Bt * T * T * f32
    est = 2 * (2 * act + weights + small) + act + interm + (4 << 20)
    return int(min(max(32 << 20, est), 96 << 20))


def encoder_pallas(x, pe, p, n_head, batch_block=None):
    """x: (B, T, D) f32 embeddings; pe: (T, D); p: stacked parameter dict."""
    B, T, D = x.shape
    L = p["wq"].shape[0]
    d_ff = p["w1"].shape[2]
    Bt = batch_block or _choose_batch_block(B, T)
    assert B % Bt == 0

    def bcast(shape):            # grid-invariant whole-array block
        n = len(shape)
        return pl.BlockSpec(shape, lambda b, l, _n=n: (0,) * _n)

    def per_layer(shape):        # stacked-over-layers block, leading dim squeezed
        n = len(shape)
        return pl.BlockSpec((None,) + shape, lambda b, l, _n=n: (l,) + (0,) * _n)

    x_spec = pl.BlockSpec((Bt, T, D), lambda b, l: (b, 0, 0))

    in_specs = [
        x_spec,
        bcast((T, D)),                               # pe
        bcast((1, D)), bcast((1, D)),                # final norm w, b
        per_layer((1, D)), per_layer((1, D)),        # ln1 w, b
        per_layer((D, D)), per_layer((1, D)),        # wq, bq
        per_layer((D, D)), per_layer((1, D)),        # wk, bk
        per_layer((D, D)), per_layer((1, D)),        # wv, bv
        per_layer((D, D)), per_layer((1, D)),        # wo, bo
        per_layer((1, D)), per_layer((1, D)),        # ln2 w, b
        per_layer((D, d_ff)), per_layer((1, d_ff)),  # w1, b1
        per_layer((d_ff, D)), per_layer((1, D)),     # w2, b2
    ]

    return pl.pallas_call(
        functools.partial(_encoder_kernel, n_head),
        out_shape=jax.ShapeDtypeStruct((B, T, D), jnp.float32),
        grid_spec=pltpu.PrefetchScalarGridSpec(
            num_scalar_prefetch=0,
            grid=(B // Bt, L),
            in_specs=in_specs,
            out_specs=x_spec,
            scratch_shapes=[pltpu.VMEM((Bt, T, D), jnp.float32)],
        ),
        compiler_params=pltpu.CompilerParams(
            dimension_semantics=("parallel", "arbitrary"),
            vmem_limit_bytes=_vmem_limit_bytes(Bt, T, D, d_ff)),
    )(x, pe, p["norm_w"], p["norm_b"],
      p["ln1_w"], p["ln1_b"],
      p["wq"], p["bq"], p["wk"], p["bk"], p["wv"], p["bv"],
      p["wo"], p["bo"],
      p["ln2_w"], p["ln2_b"],
      p["w1"], p["b1"], p["w2"], p["b2"])


# --------------------------- parameter construction ---------------------------

def make_positional_encoding(max_len, d_model):
    position = jnp.arange(max_len, dtype=jnp.float32)[:, None]
    div_term = jnp.exp(jnp.arange(0, d_model, 2, dtype=jnp.float32)
                       * (-math.log(10000.0) / d_model))
    ang = position * div_term
    pe = jnp.zeros((max_len, d_model), jnp.float32)
    pe = pe.at[:, 0::2].set(jnp.sin(ang))
    pe = pe.at[:, 1::2].set(jnp.cos(ang))
    return pe


def init_params(key, vocab_size, d_model, n_layers, d_ff, max_len, n_head):
    assert d_model % n_head == 0, "d_model must be divisible by n_head"
    keys = jax.random.split(key, 1 + 6 * n_layers)
    emb_key, wkeys = keys[0], keys[1:]

    def w(k, shape, scale=0.02):
        return scale * jax.random.normal(k, shape, dtype=jnp.float32)

    wq, wk_, wv, wo, w1, w2 = [], [], [], [], [], []
    kiter = iter(wkeys)
    for _ in range(n_layers):
        wq.append(w(next(kiter), (d_model, d_model)))   # PyTorch (out, in)
        wk_.append(w(next(kiter), (d_model, d_model)))
        wv.append(w(next(kiter), (d_model, d_model)))
        wo.append(w(next(kiter), (d_model, d_model)))
        w1.append(w(next(kiter), (d_ff, d_model)))
        w2.append(w(next(kiter), (d_model, d_ff)))

    # Stack over layers, pre-transpose to (in, out), cast to bf16 for the MXU.
    def stack_t(ws):
        return jnp.stack([m.T for m in ws]).astype(jnp.bfloat16)

    zeros_d = lambda: jnp.zeros((n_layers, 1, d_model), jnp.float32)
    params = {
        "embedding": w(emb_key, (vocab_size, d_model), scale=1.0),
        "pe": make_positional_encoding(max_len, d_model),
        "norm_w": jnp.ones((1, d_model), jnp.float32),
        "norm_b": jnp.zeros((1, d_model), jnp.float32),
        "ln1_w": jnp.ones((n_layers, 1, d_model), jnp.float32),
        "ln1_b": zeros_d(),
        "ln2_w": jnp.ones((n_layers, 1, d_model), jnp.float32),
        "ln2_b": zeros_d(),
        "wq": stack_t(wq), "bq": zeros_d(),
        "wk": stack_t(wk_), "bk": zeros_d(),
        "wv": stack_t(wv), "bv": zeros_d(),
        "wo": stack_t(wo), "bo": zeros_d(),
        "w1": stack_t(w1), "b1": jnp.zeros((n_layers, 1, d_ff), jnp.float32),
        "w2": stack_t(w2), "b2": zeros_d(),
    }
    return params


# ------------------------------- encoder forward ------------------------------

def encoder_forward(token_ids, params, n_head):
    # Embedding lookup is glue (gather), done in plain JAX.
    x = jnp.take(params["embedding"], token_ids, axis=0)    # (B, T, D) f32
    T = token_ids.shape[1]
    pe = params["pe"][:T]
    # Fused Pallas kernel: PE add + all FFT blocks + final LayerNorm.
    return encoder_pallas(x, pe, params, n_head)


# ------------------------------------ main ------------------------------------

if __name__ == "__main__":
    vocab_size = 50
    d_model = 32
    n_layers = 2
    n_head = 4
    d_ff = 64
    max_len = 64
    B, T = 2, 8

    key = jax.random.PRNGKey(0)
    k_params, k_tok = jax.random.split(key)
    params = init_params(k_params, vocab_size, d_model, n_layers, d_ff,
                         max_len, n_head)
    tokens = jax.random.randint(k_tok, (B, T), 0, vocab_size, dtype=jnp.int32)

    out = encoder_forward(tokens, params, n_head)
    out = jax.block_until_ready(out)

    assert out.shape == (B, T, d_model), out.shape
    assert bool(jnp.all(jnp.isfinite(out)))
    # TODO(synk): dropout is implemented as identity (eval mode); training-mode
    # stochastic dropout is not reproduced.
    print("KERNEL_OK")
</pallas_src>

<mosaic_0001>
module attributes {stable_mosaic.version = 11 : i64} {
  func.func @_encoder_kernel(%arg0: i32, %arg1: i32, %arg2: memref<2x8x32xf32, #tpu.memory_space<vmem>>, %arg3: memref<8x32xf32, #tpu.memory_space<vmem>>, %arg4: memref<1x32xf32, #tpu.memory_space<vmem>>, %arg5: memref<1x32xf32, #tpu.memory_space<vmem>>, %arg6: memref<1x1x32xf32, #tpu.memory_space<vmem>>, %arg7: memref<1x1x32xf32, #tpu.memory_space<vmem>>, %arg8: memref<1x32x32xbf16, #tpu.memory_space<vmem>>, %arg9: memref<1x1x32xf32, #tpu.memory_space<vmem>>, %arg10: memref<1x32x32xbf16, #tpu.memory_space<vmem>>, %arg11: memref<1x1x32xf32, #tpu.memory_space<vmem>>, %arg12: memref<1x32x32xbf16, #tpu.memory_space<vmem>>, %arg13: memref<1x1x32xf32, #tpu.memory_space<vmem>>, %arg14: memref<1x32x32xbf16, #tpu.memory_space<vmem>>, %arg15: memref<1x1x32xf32, #tpu.memory_space<vmem>>, %arg16: memref<1x1x32xf32, #tpu.memory_space<vmem>>, %arg17: memref<1x1x32xf32, #tpu.memory_space<vmem>>, %arg18: memref<1x32x64xbf16, #tpu.memory_space<vmem>>, %arg19: memref<1x1x64xf32, #tpu.memory_space<vmem>>, %arg20: memref<1x64x32xbf16, #tpu.memory_space<vmem>>, %arg21: memref<1x1x32xf32, #tpu.memory_space<vmem>>, %arg22: memref<2x8x32xf32, #tpu.memory_space<vmem>>, %arg23: memref<2x8x32xf32, #tpu.memory_space<vmem>>) attributes {dimension_semantics = [#tpu.dimension_semantics<parallel>, #tpu.dimension_semantics<arbitrary>], iteration_bounds = array<i64: 1, 2>, scalar_prefetch = 0 : i64, scratch_operands = 1 : i64, tpu.core_type = #tpu.core_type<tc>, window_params = [{transform_indices = @transform_0, window_bounds = array<i64: 2, 8, 32>}, {pipeline_mode = #tpu.pipeline_mode<synchronous>, transform_indices = @transform_1, window_bounds = array<i64: 8, 32>}, {pipeline_mode = #tpu.pipeline_mode<synchronous>, transform_indices = @transform_2, window_bounds = array<i64: 1, 32>}, {pipeline_mode = #tpu.pipeline_mode<synchronous>, transform_indices = @transform_3, window_bounds = array<i64: 1, 32>}, {transform_indices = @transform_4, window_bounds = array<i64: 1, 1, 32>}, {transform_indices = @transform_5, window_bounds = array<i64: 1, 1, 32>}, {transform_indices = @transform_6, window_bounds = array<i64: 1, 32, 32>}, {transform_indices = @transform_7, window_bounds = array<i64: 1, 1, 32>}, {transform_indices = @transform_8, window_bounds = array<i64: 1, 32, 32>}, {transform_indices = @transform_9, window_bounds = array<i64: 1, 1, 32>}, {transform_indices = @transform_10, window_bounds = array<i64: 1, 32, 32>}, {transform_indices = @transform_11, window_bounds = array<i64: 1, 1, 32>}, {transform_indices = @transform_12, window_bounds = array<i64: 1, 32, 32>}, {transform_indices = @transform_13, window_bounds = array<i64: 1, 1, 32>}, {transform_indices = @transform_14, window_bounds = array<i64: 1, 1, 32>}, {transform_indices = @transform_15, window_bounds = array<i64: 1, 1, 32>}, {transform_indices = @transform_16, window_bounds = array<i64: 1, 32, 64>}, {transform_indices = @transform_17, window_bounds = array<i64: 1, 1, 64>}, {transform_indices = @transform_18, window_bounds = array<i64: 1, 64, 32>}, {transform_indices = @transform_19, window_bounds = array<i64: 1, 1, 32>}, {transform_indices = @transform_20, window_bounds = array<i64: 2, 8, 32>}]} {
    %c0_i32 = arith.constant 0 : i32
    %0 = arith.cmpi eq, %arg1, %c0_i32 : i32
    %1 = arith.extui %0 : i1 to i32
    %c0_i32_0 = arith.constant 0 : i32
    %2 = arith.cmpi ne, %1, %c0_i32_0 : i32
    scf.if %2 {
      %c0_88 = arith.constant 0 : index
      %c0_89 = arith.constant 0 : index
      %c0_90 = arith.constant 0 : index
      %186 = vector.load %arg2[%c0_88, %c0_89, %c0_90] : memref<2x8x32xf32, #tpu.memory_space<vmem>>, vector<2x8x32xf32>
      %c0_91 = arith.constant 0 : index
      %c0_92 = arith.constant 0 : index
      %187 = vector.load %arg3[%c0_91, %c0_92] : memref<8x32xf32, #tpu.memory_space<vmem>>, vector<8x32xf32>
      %188 = vector.shape_cast %187 : vector<8x32xf32> to vector<1x8x32xf32>
      %189 = vector.broadcast %188 : vector<1x8x32xf32> to vector<2x8x32xf32>
      %190 = arith.addf %186, %189 : vector<2x8x32xf32>
      %c0_93 = arith.constant 0 : index
      %c0_94 = arith.constant 0 : index
      %c0_95 = arith.constant 0 : index
      %191 = vector.load %arg23[%c0_93, %c0_94, %c0_95] : memref<2x8x32xf32, #tpu.memory_space<vmem>>, vector<2x8x32xf32>
      tpu.vector_store %arg23[%c0_93, %c0_94, %c0_95], %190 {strides = array<i32>} : memref<2x8x32xf32, #tpu.memory_space<vmem>>, vector<2x8x32xf32>,
    } else {
    }
    %c0 = arith.constant 0 : index
    %c0_1 = arith.constant 0 : index
    %c0_2 = arith.constant 0 : index
    %3 = vector.load %arg23[%c0, %c0_1, %c0_2] : memref<2x8x32xf32, #tpu.memory_space<vmem>>, vector<2x8x32xf32>
    %4 = vector.shape_cast %3 : vector<2x8x32xf32> to vector<16x32xf32>
    %c0_3 = arith.constant 0 : index
    %c0_4 = arith.constant 0 : index
    %c0_5 = arith.constant 0 : index
    %5 = vector.load %arg6[%c0_3, %c0_4, %c0_5] : memref<1x1x32xf32, #tpu.memory_space<vmem>>, vector<1x1x32xf32>
    %6 = vector.shape_cast %5 : vector<1x1x32xf32> to vector<1x32xf32>
    %c0_6 = arith.constant 0 : index
    %c0_7 = arith.constant 0 : index
    %c0_8 = arith.constant 0 : index
    %7 = vector.load %arg7[%c0_6, %c0_7, %c0_8] : memref<1x1x32xf32, #tpu.memory_space<vmem>>, vector<1x1x32xf32>
    %8 = vector.shape_cast %7 : vector<1x1x32xf32> to vector<1x32xf32>
    %cst = arith.constant dense<0.000000e+00> : vector<16xf32>
    %9 = vector.multi_reduction <add>, %4, %cst [1] : vector<16x32xf32> to vector<16xf32>
    %10 = vector.shape_cast %9 : vector<16xf32> to vector<16x1xf32>
    %cst_9 = arith.constant 3.200000e+01 : f32
    %11 = vector.broadcast %cst_9 : f32 to vector<16x1xf32>
    %12 = arith.divf %10, %11 : vector<16x1xf32>
    %13 = vector.broadcast %12 : vector<16x1xf32> to vector<16x32xf32>
    %14 = arith.subf %4, %13 : vector<16x32xf32>
    %15 = arith.mulf %14, %14 : vector<16x32xf32>
    %cst_10 = arith.constant dense<0.000000e+00> : vector<16xf32>
    %16 = vector.multi_reduction <add>, %15, %cst_10 [1] : vector<16x32xf32> to vector<16xf32>
    %17 = vector.shape_cast %16 : vector<16xf32> to vector<16x1xf32>
    %cst_11 = arith.constant 3.200000e+01 : f32
    %18 = vector.broadcast %cst_11 : f32 to vector<16x1xf32>
    %19 = arith.divf %17, %18 : vector<16x1xf32>
    %20 = vector.broadcast %12 : vector<16x1xf32> to vector<16x32xf32>
    %21 = arith.subf %4, %20 : vector<16x32xf32>
    %cst_12 = arith.constant 9.99999974E-6 : f32
    %22 = vector.broadcast %cst_12 : f32 to vector<16x1xf32>
    %23 = arith.addf %19, %22 : vector<16x1xf32>
    %24 = math.rsqrt %23 : vector<16x1xf32>
    %25 = vector.broadcast %24 : vector<16x1xf32> to vector<16x32xf32>
    %26 = arith.mulf %21, %25 : vector<16x32xf32>
    %27 = vector.broadcast %6 : vector<1x32xf32> to vector<16x32xf32>
    %28 = arith.mulf %26, %27 : vector<16x32xf32>
    %29 = vector.broadcast %8 : vector<1x32xf32> to vector<16x32xf32>
    %30 = arith.addf %28, %29 : vector<16x32xf32>
    %31 = arith.truncf %30 : vector<16x32xf32> to vector<16x32xbf16>
    %c0_13 = arith.constant 0 : index
    %c0_14 = arith.constant 0 : index
    %c0_15 = arith.constant 0 : index
    %32 = vector.load %arg8[%c0_13, %c0_14, %c0_15] : memref<1x32x32xbf16, #tpu.memory_space<vmem>>, vector<1x32x32xbf16>
    %33 = vector.shape_cast %32 : vector<1x32x32xbf16> to vector<32x32xbf16>
    %cst_16 = arith.constant dense<0.000000e+00> : vector<16x32xf32>
    %34 = tpu.matmul %31, %33, %cst_16 {dimension_numbers = #tpu.dot_dimension_numbers<[1], [0], [0], [1], [0, 0, 1, 1], [], []>} : vector<16x32xbf16>, vector<32x32xbf16>, vector<16x32xf32> -> vector<16x32xf32>
    %c0_17 = arith.constant 0 : index
    %c0_18 = arith.constant 0 : index
    %c0_19 = arith.constant 0 : index
    %35 = vector.load %arg9[%c0_17, %c0_18, %c0_19] : memref<1x1x32xf32, #tpu.memory_space<vmem>>, vector<1x1x32xf32>
    %36 = vector.shape_cast %35 : vector<1x1x32xf32> to vector<1x32xf32>
    %37 = vector.broadcast %36 : vector<1x32xf32> to vector<16x32xf32>
    %38 = arith.addf %34, %37 : vector<16x32xf32>
    %c0_20 = arith.constant 0 : index
    %c0_21 = arith.constant 0 : index
    %c0_22 = arith.constant 0 : index
    %39 = vector.load %arg10[%c0_20, %c0_21, %c0_22] : memref<1x32x32xbf16, #tpu.memory_space<vmem>>, vector<1x32x32xbf16>
    %40 = vector.shape_cast %39 : vector<1x32x32xbf16> to vector<32x32xbf16>
    %cst_23 = arith.constant dense<0.000000e+00> : vector<16x32xf32>
    %41 = tpu.matmul %31, %40, %cst_23 {dimension_numbers = #tpu.dot_dimension_numbers<[1], [0], [0], [1], [0, 0, 1, 1], [], []>} : vector<16x32xbf16>, vector<32x32xbf16>, vector<16x32xf32> -> vector<16x32xf32>
    %c0_24 = arith.constant 0 : index
    %c0_25 = arith.constant 0 : index
    %c0_26 = arith.constant 0 : index
    %42 = vector.load %arg11[%c0_24, %c0_25, %c0_26] : memref<1x1x32xf32, #tpu.memory_space<vmem>>, vector<1x1x32xf32>
    %43 = vector.shape_cast %42 : vector<1x1x32xf32> to vector<1x32xf32>
    %44 = vector.broadcast %43 : vector<1x32xf32> to vector<16x32xf32>
    %45 = arith.addf %41, %44 : vector<16x32xf32>
    %c0_27 = arith.constant 0 : index
    %c0_28 = arith.constant 0 : index
    %c0_29 = arith.constant 0 : index
    %46 = vector.load %arg12[%c0_27, %c0_28, %c0_29] : memref<1x32x32xbf16, #tpu.memory_space<vmem>>, vector<1x32x32xbf16>
    %47 = vector.shape_cast %46 : vector<1x32x32xbf16> to vector<32x32xbf16>
    %cst_30 = arith.constant dense<0.000000e+00> : vector<16x32xf32>
    %48 = tpu.matmul %31, %47, %cst_30 {dimension_numbers = #tpu.dot_dimension_numbers<[1], [0], [0], [1], [0, 0, 1, 1], [], []>} : vector<16x32xbf16>, vector<32x32xbf16>, vector<16x32xf32> -> vector<16x32xf32>
    %c0_31 = arith.constant 0 : index
    %c0_32 = arith.constant 0 : index
    %c0_33 = arith.constant 0 : index
    %49 = vector.load %arg13[%c0_31, %c0_32, %c0_33] : memref<1x1x32xf32, #tpu.memory_space<vmem>>, vector<1x1x32xf32>
    %50 = vector.shape_cast %49 : vector<1x1x32xf32> to vector<1x32xf32>
    %51 = vector.broadcast %50 : vector<1x32xf32> to vector<16x32xf32>
    %52 = arith.addf %48, %51 : vector<16x32xf32>
    %cst_34 = arith.constant 0.353553385 : f32
    %53 = vector.broadcast %cst_34 : f32 to vector<16x32xf32>
    %54 = arith.mulf %38, %53 : vector<16x32xf32>
    %55 = vector.shape_cast %54 : vector<16x32xf32> to vector<2x8x32xf32>
    %56 = arith.truncf %55 : vector<2x8x32xf32> to vector<2x8x32xbf16>
    %57 = vector.shape_cast %45 : vector<16x32xf32> to vector<2x8x32xf32>
    %58 = arith.truncf %57 : vector<2x8x32xf32> to vector<2x8x32xbf16>
    %59 = vector.shape_cast %52 : vector<16x32xf32> to vector<2x8x32xf32>
    %60 = arith.truncf %59 : vector<2x8x32xf32> to vector<2x8x32xbf16>
    %61 = vector.extract_strided_slice %56 {offsets = [0, 0, 0], sizes = [2, 8, 8], strides = [1, 1, 1]} : vector<2x8x32xbf16> to vector<2x8x8xbf16>
    %62 = vector.extract_strided_slice %58 {offsets = [0, 0, 0], sizes = [2, 8, 8], strides = [1, 1, 1]} : vector<2x8x32xbf16> to vector<2x8x8xbf16>
    %63 = vector.extract_strided_slice %60 {offsets = [0, 0, 0], sizes = [2, 8, 8], strides = [1, 1, 1]} : vector<2x8x32xbf16> to vector<2x8x8xbf16>
    "tpu.trace_start"() <{level = 10 : i32, message = "btd,bsd->bts"}> : () -> ()
    %cst_35 = arith.constant dense<0.000000e+00> : vector<2x8x8xf32>
    %64 = tpu.matmul %61, %62, %cst_35 {dimension_numbers = #tpu.dot_dimension_numbers<[2], [2], [1], [1], [0, 0, 0, 1, 1, 1], [0], [0]>} : vector<2x8x8xbf16>, vector<2x8x8xbf16>, vector<2x8x8xf32> -> vector<2x8x8xf32>
    "tpu.trace_stop"() : () -> ()
    %cst_36 = arith.constant dense<0xFF800000> : vector<2x8xf32>
    %65 = vector.multi_reduction <maximumf>, %64, %cst_36 [2] : vector<2x8x8xf32> to vector<2x8xf32>
    %66 = vector.shape_cast %65 : vector<2x8xf32> to vector<2x8x1xf32>
    %67 = vector.broadcast %66 : vector<2x8x1xf32> to vector<2x8x8xf32>
    %68 = arith.subf %64, %67 : vector<2x8x8xf32>
    %69 = math.exp %68 : vector<2x8x8xf32>
    %cst_37 = arith.constant dense<0.000000e+00> : vector<2x8xf32>
    %70 = vector.multi_reduction <add>, %69, %cst_37 [2] : vector<2x8x8xf32> to vector<2x8xf32>
    %71 = vector.shape_cast %70 : vector<2x8xf32> to vector<2x8x1xf32>
    %72 = tpu.reciprocal %71 {approx = true} : vector<2x8x1xf32> -> vector<2x8x1xf32>
    %73 = vector.broadcast %72 : vector<2x8x1xf32> to vector<2x8x8xf32>
    %74 = arith.mulf %69, %73 : vector<2x8x8xf32>
    %75 = arith.truncf %74 : vector<2x8x8xf32> to vector<2x8x8xbf16>
    "tpu.trace_start"() <{level = 10 : i32, message = "bts,bsd->btd"}> : () -> ()
    %cst_38 = arith.constant dense<0.000000e+00> : vector<2x8x8xf32>
    %76 = tpu.matmul %75, %63, %cst_38 {dimension_numbers = #tpu.dot_dimension_numbers<[2], [1], [1], [2], [0, 0, 0, 1, 1, 2], [0], [0]>} : vector<2x8x8xbf16>, vector<2x8x8xbf16>, vector<2x8x8xf32> -> vector<2x8x8xf32>
    "tpu.trace_stop"() : () -> ()
    %77 = vector.extract_strided_slice %56 {offsets = [0, 0, 8], sizes = [2, 8, 8], strides = [1, 1, 1]} : vector<2x8x32xbf16> to vector<2x8x8xbf16>
    %78 = vector.extract_strided_slice %58 {offsets = [0, 0, 8], sizes = [2, 8, 8], strides = [1, 1, 1]} : vector<2x8x32xbf16> to vector<2x8x8xbf16>
    %79 = vector.extract_strided_slice %60 {offsets = [0, 0, 8], sizes = [2, 8, 8], strides = [1, 1, 1]} : vector<2x8x32xbf16> to vector<2x8x8xbf16>
    "tpu.trace_start"() <{level = 10 : i32, message = "btd,bsd->bts"}> : () -> ()
    %cst_39 = arith.constant dense<0.000000e+00> : vector<2x8x8xf32>
    %80 = tpu.matmul %77, %78, %cst_39 {dimension_numbers = #tpu.dot_dimension_numbers<[2], [2], [1], [1], [0, 0, 0, 1, 1, 1], [0], [0]>} : vector<2x8x8xbf16>, vector<2x8x8xbf16>, vector<2x8x8xf32> -> vector<2x8x8xf32>
    "tpu.trace_stop"() : () -> ()
    %cst_40 = arith.constant dense<0xFF800000> : vector<2x8xf32>
    %81 = vector.multi_reduction <maximumf>, %80, %cst_40 [2] : vector<2x8x8xf32> to vector<2x8xf32>
    %82 = vector.shape_cast %81 : vector<2x8xf32> to vector<2x8x1xf32>
    %83 = vector.broadcast %82 : vector<2x8x1xf32> to vector<2x8x8xf32>
    %84 = arith.subf %80, %83 : vector<2x8x8xf32>
    %85 = math.exp %84 : vector<2x8x8xf32>
    %cst_41 = arith.constant dense<0.000000e+00> : vector<2x8xf32>
    %86 = vector.multi_reduction <add>, %85, %cst_41 [2] : vector<2x8x8xf32> to vector<2x8xf32>
    %87 = vector.shape_cast %86 : vector<2x8xf32> to vector<2x8x1xf32>
    %88 = tpu.reciprocal %87 {approx = true} : vector<2x8x1xf32> -> vector<2x8x1xf32>
    %89 = vector.broadcast %88 : vector<2x8x1xf32> to vector<2x8x8xf32>
    %90 = arith.mulf %85, %89 : vector<2x8x8xf32>
    %91 = arith.truncf %90 : vector<2x8x8xf32> to vector<2x8x8xbf16>
    "tpu.trace_start"() <{level = 10 : i32, message = "bts,bsd->btd"}> : () -> ()
    %cst_42 = arith.constant dense<0.000000e+00> : vector<2x8x8xf32>
    %92 = tpu.matmul %91, %79, %cst_42 {dimension_numbers = #tpu.dot_dimension_numbers<[2], [1], [1], [2], [0, 0, 0, 1, 1, 2], [0], [0]>} : vector<2x8x8xbf16>, vector<2x8x8xbf16>, vector<2x8x8xf32> -> vector<2x8x8xf32>
    "tpu.trace_stop"() : () -> ()
    %93 = vector.extract_strided_slice %56 {offsets = [0, 0, 16], sizes = [2, 8, 8], strides = [1, 1, 1]} : vector<2x8x32xbf16> to vector<2x8x8xbf16>
    %94 = vector.extract_strided_slice %58 {offsets = [0, 0, 16], sizes = [2, 8, 8], strides = [1, 1, 1]} : vector<2x8x32xbf16> to vector<2x8x8xbf16>
    %95 = vector.extract_strided_slice %60 {offsets = [0, 0, 16], sizes = [2, 8, 8], strides = [1, 1, 1]} : vector<2x8x32xbf16> to vector<2x8x8xbf16>
    "tpu.trace_start"() <{level = 10 : i32, message = "btd,bsd->bts"}> : () -> ()
    %cst_43 = arith.constant dense<0.000000e+00> : vector<2x8x8xf32>
    %96 = tpu.matmul %93, %94, %cst_43 {dimension_numbers = #tpu.dot_dimension_numbers<[2], [2], [1], [1], [0, 0, 0, 1, 1, 1], [0], [0]>} : vector<2x8x8xbf16>, vector<2x8x8xbf16>, vector<2x8x8xf32> -> vector<2x8x8xf32>
    "tpu.trace_stop"() : () -> ()
    %cst_44 = arith.constant dense<0xFF800000> : vector<2x8xf32>
    %97 = vector.multi_reduction <maximumf>, %96, %cst_44 [2] : vector<2x8x8xf32> to vector<2x8xf32>
    %98 = vector.shape_cast %97 : vector<2x8xf32> to vector<2x8x1xf32>
    %99 = vector.broadcast %98 : vector<2x8x1xf32> to vector<2x8x8xf32>
    %100 = arith.subf %96, %99 : vector<2x8x8xf32>
    %101 = math.exp %100 : vector<2x8x8xf32>
    %cst_45 = arith.constant dense<0.000000e+00> : vector<2x8xf32>
    %102 = vector.multi_reduction <add>, %101, %cst_45 [2] : vector<2x8x8xf32> to vector<2x8xf32>
    %103 = vector.shape_cast %102 : vector<2x8xf32> to vector<2x8x1xf32>
    %104 = tpu.reciprocal %103 {approx = true} : vector<2x8x1xf32> -> vector<2x8x1xf32>
    %105 = vector.broadcast %104 : vector<2x8x1xf32> to vector<2x8x8xf32>
    %106 = arith.mulf %101, %105 : vector<2x8x8xf32>
    %107 = arith.truncf %106 : vector<2x8x8xf32> to vector<2x8x8xbf16>
    "tpu.trace_start"() <{level = 10 : i32, message = "bts,bsd->btd"}> : () -> ()
    %cst_46 = arith.constant dense<0.000000e+00> : vector<2x8x8xf32>
    %108 = tpu.matmul %107, %95, %cst_46 {dimension_numbers = #tpu.dot_dimension_numbers<[2], [1], [1], [2], [0, 0, 0, 1, 1, 2], [0], [0]>} : vector<2x8x8xbf16>, vector<2x8x8xbf16>, vector<2x8x8xf32> -> vector<2x8x8xf32>
    "tpu.trace_stop"() : () -> ()
    %109 = vector.extract_strided_slice %56 {offsets = [0, 0, 24], sizes = [2, 8, 8], strides = [1, 1, 1]} : vector<2x8x32xbf16> to vector<2x8x8xbf16>
    %110 = vector.extract_strided_slice %58 {offsets = [0, 0, 24], sizes = [2, 8, 8], strides = [1, 1, 1]} : vector<2x8x32xbf16> to vector<2x8x8xbf16>
    %111 = vector.extract_strided_slice %60 {offsets = [0, 0, 24], sizes = [2, 8, 8], strides = [1, 1, 1]} : vector<2x8x32xbf16> to vector<2x8x8xbf16>
    "tpu.trace_start"() <{level = 10 : i32, message = "btd,bsd->bts"}> : () -> ()
    %cst_47 = arith.constant dense<0.000000e+00> : vector<2x8x8xf32>
    %112 = tpu.matmul %109, %110, %cst_47 {dimension_numbers = #tpu.dot_dimension_numbers<[2], [2], [1], [1], [0, 0, 0, 1, 1, 1], [0], [0]>} : vector<2x8x8xbf16>, vector<2x8x8xbf16>, vector<2x8x8xf32> -> vector<2x8x8xf32>
    "tpu.trace_stop"() : () -> ()
    %cst_48 = arith.constant dense<0xFF800000> : vector<2x8xf32>
    %113 = vector.multi_reduction <maximumf>, %112, %cst_48 [2] : vector<2x8x8xf32> to vector<2x8xf32>
    %114 = vector.shape_cast %113 : vector<2x8xf32> to vector<2x8x1xf32>
    %115 = vector.broadcast %114 : vector<2x8x1xf32> to vector<2x8x8xf32>
    %116 = arith.subf %112, %115 : vector<2x8x8xf32>
    %117 = math.exp %116 : vector<2x8x8xf32>
    %cst_49 = arith.constant dense<0.000000e+00> : vector<2x8xf32>
    %118 = vector.multi_reduction <add>, %117, %cst_49 [2] : vector<2x8x8xf32> to vector<2x8xf32>
    %119 = vector.shape_cast %118 : vector<2x8xf32> to vector<2x8x1xf32>
    %120 = tpu.reciprocal %119 {approx = true} : vector<2x8x1xf32> -> vector<2x8x1xf32>
    %121 = vector.broadcast %120 : vector<2x8x1xf32> to vector<2x8x8xf32>
    %122 = arith.mulf %117, %121 : vector<2x8x8xf32>
    %123 = arith.truncf %122 : vector<2x8x8xf32> to vector<2x8x8xbf16>
    "tpu.trace_start"() <{level = 10 : i32, message = "bts,bsd->btd"}> : () -> ()
    %cst_50 = arith.constant dense<0.000000e+00> : vector<2x8x8xf32>
    %124 = tpu.matmul %123, %111, %cst_50 {dimension_numbers = #tpu.dot_dimension_numbers<[2], [1], [1], [2], [0, 0, 0, 1, 1, 2], [0], [0]>} : vector<2x8x8xbf16>, vector<2x8x8xbf16>, vector<2x8x8xf32> -> vector<2x8x8xf32>
    "tpu.trace_stop"() : () -> ()
    %125 = tpu.concatenate %76, %92, %108, %124 in 2 : vector<2x8x8xf32>, vector<2x8x8xf32>, vector<2x8x8xf32>, vector<2x8x8xf32> -> vector<2x8x32xf32>
    %126 = vector.shape_cast %125 : vector<2x8x32xf32> to vector<16x32xf32>
    %127 = arith.truncf %126 : vector<16x32xf32> to vector<16x32xbf16>
    %c0_51 = arith.constant 0 : index
    %c0_52 = arith.constant 0 : index
    %c0_53 = arith.constant 0 : index
    %128 = vector.load %arg14[%c0_51, %c0_52, %c0_53] : memref<1x32x32xbf16, #tpu.memory_space<vmem>>, vector<1x32x32xbf16>
    %129 = vector.shape_cast %128 : vector<1x32x32xbf16> to vector<32x32xbf16>
    %cst_54 = arith.constant dense<0.000000e+00> : vector<16x32xf32>
    %130 = tpu.matmul %127, %129, %cst_54 {dimension_numbers = #tpu.dot_dimension_numbers<[1], [0], [0], [1], [0, 0, 1, 1], [], []>} : vector<16x32xbf16>, vector<32x32xbf16>, vector<16x32xf32> -> vector<16x32xf32>
    %c0_55 = arith.constant 0 : index
    %c0_56 = arith.constant 0 : index
    %c0_57 = arith.constant 0 : index
    %131 = vector.load %arg15[%c0_55, %c0_56, %c0_57] : memref<1x1x32xf32, #tpu.memory_space<vmem>>, vector<1x1x32xf32>
    %132 = vector.shape_cast %131 : vector<1x1x32xf32> to vector<1x32xf32>
    %133 = vector.broadcast %132 : vector<1x32xf32> to vector<16x32xf32>
    %134 = arith.addf %130, %133 : vector<16x32xf32>
    %135 = arith.addf %4, %134 : vector<16x32xf32>
    %c0_58 = arith.constant 0 : index
    %c0_59 = arith.constant 0 : index
    %c0_60 = arith.constant 0 : index
    %136 = vector.load %arg16[%c0_58, %c0_59, %c0_60] : memref<1x1x32xf32, #tpu.memory_space<vmem>>, vector<1x1x32xf32>
    %137 = vector.shape_cast %136 : vector<1x1x32xf32> to vector<1x32xf32>
    %c0_61 = arith.constant 0 : index
    %c0_62 = arith.constant 0 : index
    %c0_63 = arith.constant 0 : index
    %138 = vector.load %arg17[%c0_61, %c0_62, %c0_63] : memref<1x1x32xf32, #tpu.memory_space<vmem>>, vector<1x1x32xf32>
    %139 = vector.shape_cast %138 : vector<1x1x32xf32> to vector<1x32xf32>
    %cst_64 = arith.constant dense<0.000000e+00> : vector<16xf32>
    %140 = vector.multi_reduction <add>, %135, %cst_64 [1] : vector<16x32xf32> to vector<16xf32>
    %141 = vector.shape_cast %140 : vector<16xf32> to vector<16x1xf32>
    %cst_65 = arith.constant 3.200000e+01 : f32
    %142 = vector.broadcast %cst_65 : f32 to vector<16x1xf32>
    %143 = arith.divf %141, %142 : vector<16x1xf32>
    %144 = vector.broadcast %143 : vector<16x1xf32> to vector<16x32xf32>
    %145 = arith.subf %135, %144 : vector<16x32xf32>
    %146 = arith.mulf %145, %145 : vector<16x32xf32>
    %cst_66 = arith.constant dense<0.000000e+00> : vector<16xf32>
    %147 = vector.multi_reduction <add>, %146, %cst_66 [1] : vector<16x32xf32> to vector<16xf32>
    %148 = vector.shape_cast %147 : vector<16xf32> to vector<16x1xf32>
    %cst_67 = arith.constant 3.200000e+01 : f32
    %149 = vector.broadcast %cst_67 : f32 to vector<16x1xf32>
    %150 = arith.divf %148, %149 : vector<16x1xf32>
    %151 = vector.broadcast %143 : vector<16x1xf32> to vector<16x32xf32>
    %152 = arith.subf %135, %151 : vector<16x32xf32>
    %cst_68 = arith.constant 9.99999974E-6 : f32
    %153 = vector.broadcast %cst_68 : f32 to vector<16x1xf32>
    %154 = arith.addf %150, %153 : vector<16x1xf32>
    %155 = math.rsqrt %154 : vector<16x1xf32>
    %156 = vector.broadcast %155 : vector<16x1xf32> to vector<16x32xf32>
    %157 = arith.mulf %152, %156 : vector<16x32xf32>
    %158 = vector.broadcast %137 : vector<1x32xf32> to vector<16x32xf32>
    %159 = arith.mulf %157, %158 : vector<16x32xf32>
    %160 = vector.broadcast %139 : vector<1x32xf32> to vector<16x32xf32>
    %161 = arith.addf %159, %160 : vector<16x32xf32>
    %162 = arith.truncf %161 : vector<16x32xf32> to vector<16x32xbf16>
    %c0_69 = arith.constant 0 : index
    %c0_70 = arith.constant 0 : index
    %c0_71 = arith.constant 0 : index
    %163 = vector.load %arg18[%c0_69, %c0_70, %c0_71] : memref<1x32x64xbf16, #tpu.memory_space<vmem>>, vector<1x32x64xbf16>
    %164 = vector.shape_cast %163 : vector<1x32x64xbf16> to vector<32x64xbf16>
    %cst_72 = arith.constant dense<0.000000e+00> : vector<16x64xf32>
    %165 = tpu.matmul %162, %164, %cst_72 {dimension_numbers = #tpu.dot_dimension_numbers<[1], [0], [0], [1], [0, 0, 1, 1], [], []>} : vector<16x32xbf16>, vector<32x64xbf16>, vector<16x64xf32> -> vector<16x64xf32>
    %c0_73 = arith.constant 0 : index
    %c0_74 = arith.constant 0 : index
    %c0_75 = arith.constant 0 : index
    %166 = vector.load %arg19[%c0_73, %c0_74, %c0_75] : memref<1x1x64xf32, #tpu.memory_space<vmem>>, vector<1x1x64xf32>
    %167 = vector.shape_cast %166 : vector<1x1x64xf32> to vector<1x64xf32>
    %168 = vector.broadcast %167 : vector<1x64xf32> to vector<16x64xf32>
    %169 = arith.addf %165, %168 : vector<16x64xf32>
    %cst_76 = arith.constant 0.000000e+00 : f32
    %170 = vector.broadcast %cst_76 : f32 to vector<16x64xf32>
    %171 = arith.maximumf %169, %170 : vector<16x64xf32>
    %172 = arith.truncf %171 : vector<16x64xf32> to vector<16x64xbf16>
    %c0_77 = arith.constant 0 : index
    %c0_78 = arith.constant 0 : index
    %c0_79 = arith.constant 0 : index
    %173 = vector.load %arg20[%c0_77, %c0_78, %c0_79] : memref<1x64x32xbf16, #tpu.memory_space<vmem>>, vector<1x64x32xbf16>
    %174 = vector.shape_cast %173 : vector<1x64x32xbf16> to vector<64x32xbf16>
    %cst_80 = arith.constant dense<0.000000e+00> : vector<16x32xf32>
    %175 = tpu.matmul %172, %174, %cst_80 {dimension_numbers = #tpu.dot_dimension_numbers<[1], [0], [0], [1], [0, 0, 1, 1], [], []>} : vector<16x64xbf16>, vector<64x32xbf16>, vector<16x32xf32> -> vector<16x32xf32>
    %c0_81 = arith.constant 0 : index
    %c0_82 = arith.constant 0 : index
    %c0_83 = arith.constant 0 : index
    %176 = vector.load %arg21[%c0_81, %c0_82, %c0_83] : memref<1x1x32xf32, #tpu.memory_space<vmem>>, vector<1x1x32xf32>
    %177 = vector.shape_cast %176 : vector<1x1x32xf32> to vector<1x32xf32>
    %178 = vector.broadcast %177 : vector<1x32xf32> to vector<16x32xf32>
    %179 = arith.addf %175, %178 : vector<16x32xf32>
    %180 = arith.addf %135, %179 : vector<16x32xf32>
    %181 = vector.shape_cast %180 : vector<16x32xf32> to vector<2x8x32xf32>
    %c0_84 = arith.constant 0 : index
    %c0_85 = arith.constant 0 : index
    %c0_86 = arith.constant 0 : index
    %182 = vector.load %arg23[%c0_84, %c0_85, %c0_86] : memref<2x8x32xf32, #tpu.memory_space<vmem>>, vector<2x8x32xf32>
    tpu.vector_store %arg23[%c0_84, %c0_85, %c0_86], %181 {strides = array<i32>} : memref<2x8x32xf32, #tpu.memory_space<vmem>>, vector<2x8x32xf32>,
    %c1_i32 = arith.constant 1 : i32
    %183 = arith.cmpi eq, %arg1, %c1_i32 : i32
    %184 = arith.extui %183 : i1 to i32
    %c0_i32_87 = arith.constant 0 : i32
    %185 = arith.cmpi ne, %184, %c0_i32_87 : i32
    scf.if %185 {
      %c0_88 = arith.constant 0 : index
      %c0_89 = arith.constant 0 : index
      %186 = vector.load %arg4[%c0_88, %c0_89] : memref<1x32xf32, #tpu.memory_space<vmem>>, vector<1x32xf32>
      %c0_90 = arith.constant 0 : index
      %c0_91 = arith.constant 0 : index
      %187 = vector.load %arg5[%c0_90, %c0_91] : memref<1x32xf32, #tpu.memory_space<vmem>>, vector<1x32xf32>
      %cst_92 = arith.constant dense<0.000000e+00> : vector<16xf32>
      %188 = vector.multi_reduction <add>, %180, %cst_92 [1] : vector<16x32xf32> to vector<16xf32>
      %189 = vector.shape_cast %188 : vector<16xf32> to vector<16x1xf32>
      %cst_93 = arith.constant 3.200000e+01 : f32
      %190 = vector.broadcast %cst_93 : f32 to vector<16x1xf32>
      %191 = arith.divf %189, %190 : vector<16x1xf32>
      %192 = vector.broadcast %191 : vector<16x1xf32> to vector<16x32xf32>
      %193 = arith.subf %180, %192 : vector<16x32xf32>
      %194 = arith.mulf %193, %193 : vector<16x32xf32>
      %cst_94 = arith.constant dense<0.000000e+00> : vector<16xf32>
      %195 = vector.multi_reduction <add>, %194, %cst_94 [1] : vector<16x32xf32> to vector<16xf32>
      %196 = vector.shape_cast %195 : vector<16xf32> to vector<16x1xf32>
      %cst_95 = arith.constant 3.200000e+01 : f32
      %197 = vector.broadcast %cst_95 : f32 to vector<16x1xf32>
      %198 = arith.divf %196, %197 : vector<16x1xf32>
      %199 = vector.broadcast %191 : vector<16x1xf32> to vector<16x32xf32>
      %200 = arith.subf %180, %199 : vector<16x32xf32>
      %cst_96 = arith.constant 9.99999974E-6 : f32
      %201 = vector.broadcast %cst_96 : f32 to vector<16x1xf32>
      %202 = arith.addf %198, %201 : vector<16x1xf32>
      %203 = math.rsqrt %202 : vector<16x1xf32>
      %204 = vector.broadcast %203 : vector<16x1xf32> to vector<16x32xf32>
      %205 = arith.mulf %200, %204 : vector<16x32xf32>
      %206 = vector.broadcast %186 : vector<1x32xf32> to vector<16x32xf32>
      %207 = arith.mulf %205, %206 : vector<16x32xf32>
      %208 = vector.broadcast %187 : vector<1x32xf32> to vector<16x32xf32>
      %209 = arith.addf %207, %208 : vector<16x32xf32>
      %210 = vector.shape_cast %209 : vector<16x32xf32> to vector<2x8x32xf32>
      %c0_97 = arith.constant 0 : index
      %c0_98 = arith.constant 0 : index
      %c0_99 = arith.constant 0 : index
      %211 = vector.load %arg22[%c0_97, %c0_98, %c0_99] : memref<2x8x32xf32, #tpu.memory_space<vmem>>, vector<2x8x32xf32>
      tpu.vector_store %arg22[%c0_97, %c0_98, %c0_99], %210 {strides = array<i32>} : memref<2x8x32xf32, #tpu.memory_space<vmem>>, vector<2x8x32xf32>,
    } else {
    }
    return
  }
  func.func @transform_0(%arg0: i32, %arg1: i32) -> (i32, i32, i32) {
    %c0_i32 = arith.constant 0 : i32
    %c0_i32_0 = arith.constant 0 : i32
    %c0_i32_1 = arith.constant 0 : i32
    return %arg0, %c0_i32, %c0_i32_0 : i32, i32, i32
  }
  func.func @transform_1(%arg0: i32, %arg1: i32) -> (i32, i32) {
    %c0_i32 = arith.constant 0 : i32
    %c0_i32_0 = arith.constant 0 : i32
    %c0_i32_1 = arith.constant 0 : i32
    return %c0_i32, %c0_i32_0 : i32, i32
  }
  func.func @transform_2(%arg0: i32, %arg1: i32) -> (i32, i32) {
    %c0_i32 = arith.constant 0 : i32
    %c0_i32_0 = arith.constant 0 : i32
    %c0_i32_1 = arith.constant 0 : i32
    return %c0_i32, %c0_i32_0 : i32, i32
  }
  func.func @transform_3(%arg0: i32, %arg1: i32) -> (i32, i32) {
    %c0_i32 = arith.constant 0 : i32
    %c0_i32_0 = arith.constant 0 : i32
    %c0_i32_1 = arith.constant 0 : i32
    return %c0_i32, %c0_i32_0 : i32, i32
  }
  func.func @transform_4(%arg0: i32, %arg1: i32) -> (i32, i32, i32) {
    %c0_i32 = arith.constant 0 : i32
    %c0_i32_0 = arith.constant 0 : i32
    %c0_i32_1 = arith.constant 0 : i32
    return %arg1, %c0_i32, %c0_i32_0 : i32, i32, i32
  }
  func.func @transform_5(%arg0: i32, %arg1: i32) -> (i32, i32, i32) {
    %c0_i32 = arith.constant 0 : i32
    %c0_i32_0 = arith.constant 0 : i32
    %c0_i32_1 = arith.constant 0 : i32
    return %arg1, %c0_i32, %c0_i32_0 : i32, i32, i32
  }
  func.func @transform_6(%arg0: i32, %arg1: i32) -> (i32, i32, i32) {
    %c0_i32 = arith.constant 0 : i32
    %c0_i32_0 = arith.constant 0 : i32
    %c0_i32_1 = arith.constant 0 : i32
    return %arg1, %c0_i32, %c0_i32_0 : i32, i32, i32
  }
  func.func @transform_7(%arg0: i32, %arg1: i32) -> (i32, i32, i32) {
    %c0_i32 = arith.constant 0 : i32
    %c0_i32_0 = arith.constant 0 : i32
    %c0_i32_1 = arith.constant 0 : i32
    return %arg1, %c0_i32, %c0_i32_0 : i32, i32, i32
  }
  func.func @transform_8(%arg0: i32, %arg1: i32) -> (i32, i32, i32) {
    %c0_i32 = arith.constant 0 : i32
    %c0_i32_0 = arith.constant 0 : i32
    %c0_i32_1 = arith.constant 0 : i32
    return %arg1, %c0_i32, %c0_i32_0 : i32, i32, i32
  }
  func.func @transform_9(%arg0: i32, %arg1: i32) -> (i32, i32, i32) {
    %c0_i32 = arith.constant 0 : i32
    %c0_i32_0 = arith.constant 0 : i32
    %c0_i32_1 = arith.constant 0 : i32
    return %arg1, %c0_i32, %c0_i32_0 : i32, i32, i32
  }
  func.func @transform_10(%arg0: i32, %arg1: i32) -> (i32, i32, i32) {
    %c0_i32 = arith.constant 0 : i32
    %c0_i32_0 = arith.constant 0 : i32
    %c0_i32_1 = arith.constant 0 : i32
    return %arg1, %c0_i32, %c0_i32_0 : i32, i32, i32
  }
  func.func @transform_11(%arg0: i32, %arg1: i32) -> (i32, i32, i32) {
    %c0_i32 = arith.constant 0 : i32
    %c0_i32_0 = arith.constant 0 : i32
    %c0_i32_1 = arith.constant 0 : i32
    return %arg1, %c0_i32, %c0_i32_0 : i32, i32, i32
  }
  func.func @transform_12(%arg0: i32, %arg1: i32) -> (i32, i32, i32) {
    %c0_i32 = arith.constant 0 : i32
    %c0_i32_0 = arith.constant 0 : i32
    %c0_i32_1 = arith.constant 0 : i32
    return %arg1, %c0_i32, %c0_i32_0 : i32, i32, i32
  }
  func.func @transform_13(%arg0: i32, %arg1: i32) -> (i32, i32, i32) {
    %c0_i32 = arith.constant 0 : i32
    %c0_i32_0 = arith.constant 0 : i32
    %c0_i32_1 = arith.constant 0 : i32
    return %arg1, %c0_i32, %c0_i32_0 : i32, i32, i32
  }
  func.func @transform_14(%arg0: i32, %arg1: i32) -> (i32, i32, i32) {
    %c0_i32 = arith.constant 0 : i32
    %c0_i32_0 = arith.constant 0 : i32
    %c0_i32_1 = arith.constant 0 : i32
    return %arg1, %c0_i32, %c0_i32_0 : i32, i32, i32
  }
  func.func @transform_15(%arg0: i32, %arg1: i32) -> (i32, i32, i32) {
    %c0_i32 = arith.constant 0 : i32
    %c0_i32_0 = arith.constant 0 : i32
    %c0_i32_1 = arith.constant 0 : i32
    return %arg1, %c0_i32, %c0_i32_0 : i32, i32, i32
  }
  func.func @transform_16(%arg0: i32, %arg1: i32) -> (i32, i32, i32) {
    %c0_i32 = arith.constant 0 : i32
    %c0_i32_0 = arith.constant 0 : i32
    %c0_i32_1 = arith.constant 0 : i32
    return %arg1, %c0_i32, %c0_i32_0 : i32, i32, i32
  }
  func.func @transform_17(%arg0: i32, %arg1: i32) -> (i32, i32, i32) {
    %c0_i32 = arith.constant 0 : i32
    %c0_i32_0 = arith.constant 0 : i32
    %c0_i32_1 = arith.constant 0 : i32
    return %arg1, %c0_i32, %c0_i32_0 : i32, i32, i32
  }
  func.func @transform_18(%arg0: i32, %arg1: i32) -> (i32, i32, i32) {
    %c0_i32 = arith.constant 0 : i32
    %c0_i32_0 = arith.constant 0 : i32
    %c0_i32_1 = arith.constant 0 : i32
    return %arg1, %c0_i32, %c0_i32_0 : i32, i32, i32
  }
  func.func @transform_19(%arg0: i32, %arg1: i32) -> (i32, i32, i32) {
    %c0_i32 = arith.constant 0 : i32
    %c0_i32_0 = arith.constant 0 : i32
    %c0_i32_1 = arith.constant 0 : i32
    return %arg1, %c0_i32, %c0_i32_0 : i32, i32, i32
  }
  func.func @transform_20(%arg0: i32, %arg1: i32) -> (i32, i32, i32) {
    %c0_i32 = arith.constant 0 : i32
    %c0_i32_0 = arith.constant 0 : i32
    %c0_i32_1 = arith.constant 0 : i32
    return %arg0, %c0_i32, %c0_i32_0 : i32, i32, i32
  }
}

</mosaic_0001>

<llo_original>
// kernel: tpu_custom_call.1
$region0: #{tpu_custom_call.1}
  #allocation0 [shape = 'u32[]', space=smem, size = 0x4, offset = 0x4, fixed_abs, tag = 'smem constant byte address 0x4 - core index']
  #allocation1 [shape = 'u32[72,128]{1,0:T(1,128)}', space=vmem, size = 0x9000, scoped, tag = 'internal scratch']
  #allocation2 [shape = 'f32[2,8,32]{2,1,0:T(8,128)}', space=vmem, size = 0x2000, scoped, tag = 'scratch operand']
  %s0 = inlined_call_operand.hbm [shape: f32[2,8,32], index: 0, kind: input, shape index: {}]
  %s1 = inlined_call_operand.hbm [shape: f32[8,32], index: 1, kind: input, shape index: {}]
  %s2 = inlined_call_operand.vmem [shape: f32[1,32], index: 2, kind: input, shape index: {}]
  %s3 = inlined_call_operand.hbm [shape: f32[1,32], index: 3, kind: input, shape index: {}]
  %s4 = inlined_call_operand.vmem [shape: f32[2,1,32], index: 4, kind: input, shape index: {}]
  %s5 = inlined_call_operand.hbm [shape: f32[2,1,32], index: 5, kind: input, shape index: {}]
  %s6 = inlined_call_operand.vmem [shape: bf16[2,32,32], index: 6, kind: input, shape index: {}]
  %s7 = inlined_call_operand.vmem [shape: f32[2,1,32], index: 7, kind: input, shape index: {}]
  %s8 = inlined_call_operand.vmem [shape: bf16[2,32,32], index: 8, kind: input, shape index: {}]
  %s9 = inlined_call_operand.vmem [shape: f32[2,1,32], index: 9, kind: input, shape index: {}]
  %s10 = inlined_call_operand.vmem [shape: bf16[2,32,32], index: 10, kind: input, shape index: {}]
  %s11 = inlined_call_operand.vmem [shape: f32[2,1,32], index: 11, kind: input, shape index: {}]
  %s12 = inlined_call_operand.hbm [shape: bf16[2,32,32], index: 12, kind: input, shape index: {}]
  %s13 = inlined_call_operand.vmem [shape: f32[2,1,32], index: 13, kind: input, shape index: {}]
  %s14 = inlined_call_operand.vmem [shape: f32[2,1,32], index: 14, kind: input, shape index: {}]
  %s15 = inlined_call_operand.hbm [shape: f32[2,1,32], index: 15, kind: input, shape index: {}]
  %s16 = inlined_call_operand.hbm [shape: bf16[2,32,64], index: 16, kind: input, shape index: {}]
  %s17 = inlined_call_operand.vmem [shape: f32[2,1,64], index: 17, kind: input, shape index: {}]
  %s18 = inlined_call_operand.vmem [shape: bf16[2,64,32], index: 18, kind: input, shape index: {}]
  %s19 = inlined_call_operand.vmem [shape: f32[2,1,32], index: 19, kind: input, shape index: {}]
  %s20 = inlined_call_operand.hbm [shape: f32[2,8,32], index: 20, kind: output, shape index: {}]
  %s21 = sld [smem:[#allocation0]]
  $region149: #{tpu_custom_call.1} parent=0
    _
  %s23 = ssub.s32 1, %s21
  %s24 = scalar_select 0, %s23, %s21
  $region1: #{tpu_custom_call.1} parent=0
    #allocation3 [shape = 'u8[8192]{0}', space=vmem, size = 0x2000, scoped, tag = 'input window, operand 0, single buffered']
    #allocation4 [shape = 's32[2]{0}', space=sflag, size = 0x8, scoped, tag = 'scoped memory for tpu_custom_call.1']
    #allocation5 [shape = 's32[2]{0}', space=sflag, size = 0x8, scoped, tag = 'scoped memory for tpu_custom_call.1']
    #allocation6 [shape = 'u8[4096]{0}', space=vmem, size = 0x1000, scoped, tag = 'input window, operand 1, single buffered']
    #allocation7 [shape = 's32[1]{0}', space=sflag, size = 0x4, scoped, tag = 'scoped memory for tpu_custom_call.1']
    #allocation8 [shape = 'u8[512]{0}', space=vmem, size = 0x400, scoped, tag = 'input window, operand 3, single buffered']
    #allocation9 [shape = 'u8[1024]{0}', space=vmem, size = 0x400, scoped, tag = 'input window, operand 5']
    #allocation10 [shape = 's32[2]{0}', space=sflag, size = 0x8, scoped, tag = 'scoped memory for tpu_custom_call.1']
    #allocation11 [shape = 'u8[16384]{0}', space=vmem, size = 0x4000, scoped, tag = 'input window, operand 12']
    #allocation12 [shape = 'u8[1024]{0}', space=vmem, size = 0x400, scoped, tag = 'input window, operand 15']
    #allocation13 [shape = 's32[2]{0}', space=sflag, size = 0x8, scoped, tag = 'scoped memory for tpu_custom_call.1']
    #allocation14 [shape = 'u8[16384]{0}', space=vmem, size = 0x4000, scoped, tag = 'input window, operand 16']
    #allocation15 [shape = 'u8[8192]{0}', space=vmem, size = 0x2000, scoped, tag = 'output window, operand 0, single buffered']
    %25 = vsyncpa [#allocation4], 0
    %26 = vsyncpa [#allocation7], 0
    %27 = vsyncpa [#allocation10], 0
    %s28 = scalar_lea.sflag [#allocation10], 1
    %29 = vsyncpa %s28, 0
    %30 = vsyncpa [#allocation13], 0
    %s31 = scalar_lea.sflag [#allocation13], 1
    %32 = vsyncpa %s31, 0
    %33 = vsyncpa [#allocation5], 0
    loop: start=0, step=1, limit=4
    $region2: #{tpu_custom_call.1} parent=1 // loop_pre_header
      _
    $region3: #{tpu_custom_call.1} parent=1 // loop_header
      %s35 = sphi 0, %s39
      %p36 = scmp.ge.s32.totalorder %s35, 4
      %s42 = sphi 0, %s54
      %s43 = sphi 0, %s50
      %s44 = sphi 0, %s42
      %s45 = sphi 0, %s43
      %s46 = sphi 0, %s44
      %s47 = sphi 0, %s45
      %s57 = sphi 0, %s59
      %s60 = sphi 0, %s57
      %s61 = sphi 0, %s60
      %s77 = sphi 0, %s61
      %s81 = sphi 0, %s81
      %s83 = sphi 0, %s81
      %s84 = sphi 0, %s83
      %s98 = sphi 0, %s84
      %s102 = sphi 0, %s102
      %s104 = sphi 0, %s102
      %s105 = sphi 0, %s104
      %s119 = sphi 0, %s105
      %s123 = sphi 0, %s123
      %s125 = sphi 0, %s123
      %s126 = sphi 0, %s125
      %s140 = sphi 0, %s126
      %s146 = sphi 0, %s148
      %s149 = sphi 0, %s146
      %s150 = sphi 0, %s149
      %s166 = sphi 0, %s150
      %s172 = sphi 0, %s174
      %s175 = sphi 0, %s172
      %s176 = sphi 0, %s175
      %s192 = sphi 0, %s176
      %s198 = sphi 0, %s200
      %s201 = sphi 0, %s198
      %s202 = sphi 0, %s201
      %s218 = sphi 0, %s202
      %s224 = sphi 0, %s226
      %s227 = sphi 0, %s224
      %s228 = sphi 0, %s227
      %s244 = sphi 0, %s228
      %s250 = sphi 0, %s252
      %s253 = sphi 0, %s250
      %s254 = sphi 0, %s253
      %s270 = sphi 0, %s254
      %s276 = sphi 0, %s278
      %s279 = sphi 0, %s276
      %s280 = sphi 0, %s279
      %s296 = sphi 0, %s280
      %s302 = sphi 0, %s304
      %s305 = sphi 0, %s302
      %s306 = sphi 0, %s305
      %s322 = sphi 0, %s306
      %s328 = sphi 0, %s330
      %s331 = sphi 0, %s328
      %s332 = sphi 0, %s331
      %s348 = sphi 0, %s332
      %s354 = sphi 0, %s356
      %s357 = sphi 0, %s354
      %s358 = sphi 0, %s357
      %s374 = sphi 0, %s358
      %s380 = sphi 0, %s382
      %s383 = sphi 0, %s380
      %s384 = sphi 0, %s383
      %s400 = sphi 0, %s384
      %s406 = sphi 0, %s408
      %s409 = sphi 0, %s406
      %s410 = sphi 0, %s409
      %s426 = sphi 0, %s410
      %s432 = sphi 0, %s434
      %s435 = sphi 0, %s432
      %s436 = sphi 0, %s435
      %s452 = sphi 0, %s436
      %s458 = sphi 0, %s460
      %s461 = sphi 0, %s458
      %s462 = sphi 0, %s461
      %s478 = sphi 0, %s462
      %s484 = sphi 0, %s486
      %s487 = sphi 0, %s484
      %s488 = sphi 0, %s487
      %s504 = sphi 0, %s488
      %s510 = sphi 0, %s512
      %s513 = sphi 0, %s510
      %s514 = sphi 0, %s513
      %s530 = sphi 0, %s514
      %s536 = sphi 0, %s538
      %s539 = sphi 0, %s536
      %s540 = sphi 0, %s539
      %s556 = sphi 0, %s540
      %s562 = sphi 0, %s564
      %s565 = sphi 0, %s562
      %s566 = sphi 0, %s565
      %s582 = sphi 0, %s566
    $region4: #{tpu_custom_call.1} parent=1 // loop_header_branch
      %38 = sbr.rel (%p36) target = $region8
    $region5: #{tpu_custom_call.1} parent=1 // loop_body
      %s40 = ssub.s32 %s35, 1
      %s41 = ssub.s32 %s35, 2
      %s48 = sadd.s32 1, %s43
      %p49 = scmp.ge.s32.totalorder %s48, 2
      %s50 = scalar_select %p49, 0, %s48
      %s51 = sadd.s32 1, %s42
      %s52 = scalar_select %p49, %s51, %s42
      %p53 = scmp.ge.s32.totalorder %s52, 1
      %s54 = scalar_select %p53, 0, %s52
      %s55 = ssub.s32 %s42, %s54
      %p56 = scmp.eq.s32.totalorder %s55, 0
      %s58 = sadd.s32 %s57, 1
      %s59 = scalar_select %p56, %s57, %s58
      %p62 = pneg %p56
      %p63 = scmp.eq.s32.totalorder %s35, 1
      %p64 = por %p62, %p63
      %p65 = scmp.ne.s32.totalorder %s57, %s60
      %p66 = scmp.eq.s32.totalorder %s35, 0
      %p67 = por %p65, %p66
      %p68 = scmp.ne.s32.totalorder %s57, %s60
      %p69 = scmp.eq.s32.totalorder %s40, 1
      %p70 = por %p68, %p69
      %p71 = scmp.ne.s32.totalorder %s60, %s61
      %p72 = scmp.eq.s32.totalorder %s40, 0
      %p73 = por %p71, %p72
      %p74 = scmp.ne.s32.totalorder %s60, %s61
      %p75 = scmp.eq.s32.totalorder %s41, 1
      %p76 = por %p74, %p75
      %p78 = scmp.ne.s32.totalorder %s61, %s77
      %p79 = scmp.eq.s32.totalorder %s41, 0
      %p80 = por %p78, %p79
      %s82 = sadd.s32 %s81, 1
      %p85 = scmp.eq.s32.totalorder %s35, 1
      %p86 = scmp.ne.s32.totalorder %s81, %s83
      %p87 = scmp.eq.s32.totalorder %s35, 0
      %p88 = por %p86, %p87
      %p89 = scmp.ne.s32.totalorder %s81, %s83
      %p90 = scmp.eq.s32.totalorder %s40, 1
      %p91 = por %p89, %p90
      %p92 = scmp.ne.s32.totalorder %s83, %s84
      %p93 = scmp.eq.s32.totalorder %s40, 0
      %p94 = por %p92, %p93
      %p95 = scmp.ne.s32.totalorder %s83, %s84
      %p96 = scmp.eq.s32.totalorder %s41, 1
      %p97 = por %p95, %p96
      %p99 = scmp.ne.s32.totalorder %s84, %s98
      %p100 = scmp.eq.s32.totalorder %s41, 0
      %p101 = por %p99, %p100
      %s103 = sadd.s32 %s102, 1
      %p106 = scmp.eq.s32.totalorder %s35, 1
      %p107 = scmp.ne.s32.totalorder %s102, %s104
      %p108 = scmp.eq.s32.totalorder %s35, 0
      %p109 = por %p107, %p108
      %p110 = scmp.ne.s32.totalorder %s102, %s104
      %p111 = scmp.eq.s32.totalorder %s40, 1
      %p112 = por %p110, %p111
      %p113 = scmp.ne.s32.totalorder %s104, %s105
      %p114 = scmp.eq.s32.totalorder %s40, 0
      %p115 = por %p113, %p114
      %p116 = scmp.ne.s32.totalorder %s104, %s105
      %p117 = scmp.eq.s32.totalorder %s41, 1
      %p118 = por %p116, %p117
      %p120 = scmp.ne.s32.totalorder %s105, %s119
      %p121 = scmp.eq.s32.totalorder %s41, 0
      %p122 = por %p120, %p121
      %s124 = sadd.s32 %s123, 1
      %p127 = scmp.eq.s32.totalorder %s35, 1
      %p128 = scmp.ne.s32.totalorder %s123, %s125
      %p129 = scmp.eq.s32.totalorder %s35, 0
      %p130 = por %p128, %p129
      %p131 = scmp.ne.s32.totalorder %s123, %s125
      %p132 = scmp.eq.s32.totalorder %s40, 1
      %p133 = por %p131, %p132
      %p134 = scmp.ne.s32.totalorder %s125, %s126
      %p135 = scmp.eq.s32.totalorder %s40, 0
      %p136 = por %p134, %p135
      %p137 = scmp.ne.s32.totalorder %s125, %s126
      %p138 = scmp.eq.s32.totalorder %s41, 1
      %p139 = por %p137, %p138
      %p141 = scmp.ne.s32.totalorder %s126, %s140
      %p142 = scmp.eq.s32.totalorder %s41, 0
      %p143 = por %p141, %p142
      %s144 = ssub.s32 %s43, %s50
      %p145 = scmp.eq.s32.totalorder %s144, 0
      %s147 = sadd.s32 %s146, 1
      %s148 = scalar_select %p145, %s146, %s147
      %p151 = pneg %p145
      %p152 = scmp.eq.s32.totalorder %s35, 1
      %p153 = por %p151, %p152
      %p154 = scmp.ne.s32.totalorder %s146, %s149
      %p155 = scmp.eq.s32.totalorder %s35, 0
      %p156 = por %p154, %p155
      %p157 = scmp.ne.s32.totalorder %s146, %s149
      %p158 = scmp.eq.s32.totalorder %s40, 1
      %p159 = por %p157, %p158
      %p160 = scmp.ne.s32.totalorder %s149, %s150
      %p161 = scmp.eq.s32.totalorder %s40, 0
      %p162 = por %p160, %p161
      %p163 = scmp.ne.s32.totalorder %s149, %s150
      %p164 = scmp.eq.s32.totalorder %s41, 1
      %p165 = por %p163, %p164
      %p167 = scmp.ne.s32.totalorder %s150, %s166
      %p168 = scmp.eq.s32.totalorder %s41, 0
      %p169 = por %p167, %p168
      %s170 = ssub.s32 %s43, %s50
      %p171 = scmp.eq.s32.totalorder %s170, 0
      %s173 = sadd.s32 %s172, 1
      %s174 = scalar_select %p171, %s172, %s173
      %p177 = pneg %p171
      %p178 = scmp.eq.s32.totalorder %s35, 1
      %p179 = por %p177, %p178
      %p180 = scmp.ne.s32.totalorder %s172, %s175
      %p181 = scmp.eq.s32.totalorder %s35, 0
      %p182 = por %p180, %p181
      %p183 = scmp.ne.s32.totalorder %s172, %s175
      %p184 = scmp.eq.s32.totalorder %s40, 1
      %p185 = por %p183, %p184
      %p186 = scmp.ne.s32.totalorder %s175, %s176
      %p187 = scmp.eq.s32.totalorder %s40, 0
      %p188 = por %p186, %p187
      %p189 = scmp.ne.s32.totalorder %s175, %s176
      %p190 = scmp.eq.s32.totalorder %s41, 1
      %p191 = por %p189, %p190
      %p193 = scmp.ne.s32.totalorder %s176, %s192
      %p194 = scmp.eq.s32.totalorder %s41, 0
      %p195 = por %p193, %p194
      %s196 = ssub.s32 %s43, %s50
      %p197 = scmp.eq.s32.totalorder %s196, 0
      %s199 = sadd.s32 %s198, 1
      %s200 = scalar_select %p197, %s198, %s199
      %p203 = pneg %p197
      %p204 = scmp.eq.s32.totalorder %s35, 1
      %p205 = por %p203, %p204
      %p206 = scmp.ne.s32.totalorder %s198, %s201
      %p207 = scmp.eq.s32.totalorder %s35, 0
      %p208 = por %p206, %p207
      %p209 = scmp.ne.s32.totalorder %s198, %s201
      %p210 = scmp.eq.s32.totalorder %s40, 1
      %p211 = por %p209, %p210
      %p212 = scmp.ne.s32.totalorder %s201, %s202
      %p213 = scmp.eq.s32.totalorder %s40, 0
      %p214 = por %p212, %p213
      %p215 = scmp.ne.s32.totalorder %s201, %s202
      %p216 = scmp.eq.s32.totalorder %s41, 1
      %p217 = por %p215, %p216
      %p219 = scmp.ne.s32.totalorder %s202, %s218
      %p220 = scmp.eq.s32.totalorder %s41, 0
      %p221 = por %p219, %p220
      %s222 = ssub.s32 %s43, %s50
      %p223 = scmp.eq.s32.totalorder %s222, 0
      %s225 = sadd.s32 %s224, 1
      %s226 = scalar_select %p223, %s224, %s225
      %p229 = pneg %p223
      %p230 = scmp.eq.s32.totalorder %s35, 1
      %p231 = por %p229, %p230
      %p232 = scmp.ne.s32.totalorder %s224, %s227
      %p233 = scmp.eq.s32.totalorder %s35, 0
      %p234 = por %p232, %p233
      %p235 = scmp.ne.s32.totalorder %s224, %s227
      %p236 = scmp.eq.s32.totalorder %s40, 1
      %p237 = por %p235, %p236
      %p238 = scmp.ne.s32.totalorder %s227, %s228
      %p239 = scmp.eq.s32.totalorder %s40, 0
      %p240 = por %p238, %p239
      %p241 = scmp.ne.s32.totalorder %s227, %s228
      %p242 = scmp.eq.s32.totalorder %s41, 1
      %p243 = por %p241, %p242
      %p245 = scmp.ne.s32.totalorder %s228, %s244
      %p246 = scmp.eq.s32.totalorder %s41, 0
      %p247 = por %p245, %p246
      %s248 = ssub.s32 %s43, %s50
      %p249 = scmp.eq.s32.totalorder %s248, 0
      %s251 = sadd.s32 %s250, 1
      %s252 = scalar_select %p249, %s250, %s251
      %p255 = pneg %p249
      %p256 = scmp.eq.s32.totalorder %s35, 1
      %p257 = por %p255, %p256
      %p258 = scmp.ne.s32.totalorder %s250, %s253
      %p259 = scmp.eq.s32.totalorder %s35, 0
      %p260 = por %p258, %p259
      %p261 = scmp.ne.s32.totalorder %s250, %s253
      %p262 = scmp.eq.s32.totalorder %s40, 1
      %p263 = por %p261, %p262
      %p264 = scmp.ne.s32.totalorder %s253, %s254
      %p265 = scmp.eq.s32.totalorder %s40, 0
      %p266 = por %p264, %p265
      %p267 = scmp.ne.s32.totalorder %s253, %s254
      %p268 = scmp.eq.s32.totalorder %s41, 1
      %p269 = por %p267, %p268
      %p271 = scmp.ne.s32.totalorder %s254, %s270
      %p272 = scmp.eq.s32.totalorder %s41, 0
      %p273 = por %p271, %p272
      %s274 = ssub.s32 %s43, %s50
      %p275 = scmp.eq.s32.totalorder %s274, 0
      %s277 = sadd.s32 %s276, 1
      %s278 = scalar_select %p275, %s276, %s277
      %p281 = pneg %p275
      %p282 = scmp.eq.s32.totalorder %s35, 1
      %p283 = por %p281, %p282
      %p284 = scmp.ne.s32.totalorder %s276, %s279
      %p285 = scmp.eq.s32.totalorder %s35, 0
      %p286 = por %p284, %p285
      %p287 = scmp.ne.s32.totalorder %s276, %s279
      %p288 = scmp.eq.s32.totalorder %s40, 1
      %p289 = por %p287, %p288
      %p290 = scmp.ne.s32.totalorder %s279, %s280
      %p291 = scmp.eq.s32.totalorder %s40, 0
      %p292 = por %p290, %p291
      %p293 = scmp.ne.s32.totalorder %s279, %s280
      %p294 = scmp.eq.s32.totalorder %s41, 1
      %p295 = por %p293, %p294
      %p297 = scmp.ne.s32.totalorder %s280, %s296
      %p298 = scmp.eq.s32.totalorder %s41, 0
      %p299 = por %p297, %p298
      %s300 = ssub.s32 %s43, %s50
      %p301 = scmp.eq.s32.totalorder %s300, 0
      %s303 = sadd.s32 %s302, 1
      %s304 = scalar_select %p301, %s302, %s303
      %p307 = pneg %p301
      %p308 = scmp.eq.s32.totalorder %s35, 1
      %p309 = por %p307, %p308
      %p310 = scmp.ne.s32.totalorder %s302, %s305
      %p311 = scmp.eq.s32.totalorder %s35, 0
      %p312 = por %p310, %p311
      %p313 = scmp.ne.s32.totalorder %s302, %s305
      %p314 = scmp.eq.s32.totalorder %s40, 1
      %p315 = por %p313, %p314
      %p316 = scmp.ne.s32.totalorder %s305, %s306
      %p317 = scmp.eq.s32.totalorder %s40, 0
      %p318 = por %p316, %p317
      %p319 = scmp.ne.s32.totalorder %s305, %s306
      %p320 = scmp.eq.s32.totalorder %s41, 1
      %p321 = por %p319, %p320
      %p323 = scmp.ne.s32.totalorder %s306, %s322
      %p324 = scmp.eq.s32.totalorder %s41, 0
      %p325 = por %p323, %p324
      %s326 = ssub.s32 %s43, %s50
      %p327 = scmp.eq.s32.totalorder %s326, 0
      %s329 = sadd.s32 %s328, 1
      %s330 = scalar_select %p327, %s328, %s329
      %p333 = pneg %p327
      %p334 = scmp.eq.s32.totalorder %s35, 1
      %p335 = por %p333, %p334
      %p336 = scmp.ne.s32.totalorder %s328, %s331
      %p337 = scmp.eq.s32.totalorder %s35, 0
      %p338 = por %p336, %p337
      %p339 = scmp.ne.s32.totalorder %s328, %s331
      %p340 = scmp.eq.s32.totalorder %s40, 1
      %p341 = por %p339, %p340
      %p342 = scmp.ne.s32.totalorder %s331, %s332
      %p343 = scmp.eq.s32.totalorder %s40, 0
      %p344 = por %p342, %p343
      %p345 = scmp.ne.s32.totalorder %s331, %s332
      %p346 = scmp.eq.s32.totalorder %s41, 1
      %p347 = por %p345, %p346
      %p349 = scmp.ne.s32.totalorder %s332, %s348
      %p350 = scmp.eq.s32.totalorder %s41, 0
      %p351 = por %p349, %p350
      %s352 = ssub.s32 %s43, %s50
      %p353 = scmp.eq.s32.totalorder %s352, 0
      %s355 = sadd.s32 %s354, 1
      %s356 = scalar_select %p353, %s354, %s355
      %p359 = pneg %p353
      %p360 = scmp.eq.s32.totalorder %s35, 1
      %p361 = por %p359, %p360
      %p362 = scmp.ne.s32.totalorder %s354, %s357
      %p363 = scmp.eq.s32.totalorder %s35, 0
      %p364 = por %p362, %p363
      %p365 = scmp.ne.s32.totalorder %s354, %s357
      %p366 = scmp.eq.s32.totalorder %s40, 1
      %p367 = por %p365, %p366
      %p368 = scmp.ne.s32.totalorder %s357, %s358
      %p369 = scmp.eq.s32.totalorder %s40, 0
      %p370 = por %p368, %p369
      %p371 = scmp.ne.s32.totalorder %s357, %s358
      %p372 = scmp.eq.s32.totalorder %s41, 1
      %p373 = por %p371, %p372
      %p375 = scmp.ne.s32.totalorder %s358, %s374
      %p376 = scmp.eq.s32.totalorder %s41, 0
      %p377 = por %p375, %p376
      %s378 = ssub.s32 %s43, %s50
      %p379 = scmp.eq.s32.totalorder %s378, 0
      %s381 = sadd.s32 %s380, 1
      %s382 = scalar_select %p379, %s380, %s381
      %p385 = pneg %p379
      %p386 = scmp.eq.s32.totalorder %s35, 1
      %p387 = por %p385, %p386
      %p388 = scmp.ne.s32.totalorder %s380, %s383
      %p389 = scmp.eq.s32.totalorder %s35, 0
      %p390 = por %p388, %p389
      %p391 = scmp.ne.s32.totalorder %s380, %s383
      %p392 = scmp.eq.s32.totalorder %s40, 1
      %p393 = por %p391, %p392
      %p394 = scmp.ne.s32.totalorder %s383, %s384
      %p395 = scmp.eq.s32.totalorder %s40, 0
      %p396 = por %p394, %p395
      %p397 = scmp.ne.s32.totalorder %s383, %s384
      %p398 = scmp.eq.s32.totalorder %s41, 1
      %p399 = por %p397, %p398
      %p401 = scmp.ne.s32.totalorder %s384, %s400
      %p402 = scmp.eq.s32.totalorder %s41, 0
      %p403 = por %p401, %p402
      %s404 = ssub.s32 %s43, %s50
      %p405 = scmp.eq.s32.totalorder %s404, 0
      %s407 = sadd.s32 %s406, 1
      %s408 = scalar_select %p405, %s406, %s407
      %p411 = pneg %p405
      %p412 = scmp.eq.s32.totalorder %s35, 1
      %p413 = por %p411, %p412
      %p414 = scmp.ne.s32.totalorder %s406, %s409
      %p415 = scmp.eq.s32.totalorder %s35, 0
      %p416 = por %p414, %p415
      %p417 = scmp.ne.s32.totalorder %s406, %s409
      %p418 = scmp.eq.s32.totalorder %s40, 1
      %p419 = por %p417, %p418
      %p420 = scmp.ne.s32.totalorder %s409, %s410
      %p421 = scmp.eq.s32.totalorder %s40, 0
      %p422 = por %p420, %p421
      %p423 = scmp.ne.s32.totalorder %s409, %s410
      %p424 = scmp.eq.s32.totalorder %s41, 1
      %p425 = por %p423, %p424
      %p427 = scmp.ne.s32.totalorder %s410, %s426
      %p428 = scmp.eq.s32.totalorder %s41, 0
      %p429 = por %p427, %p428
      %s430 = ssub.s32 %s43, %s50
      %p431 = scmp.eq.s32.totalorder %s430, 0
      %s433 = sadd.s32 %s432, 1
      %s434 = scalar_select %p431, %s432, %s433
      %p437 = pneg %p431
      %p438 = scmp.eq.s32.totalorder %s35, 1
      %p439 = por %p437, %p438
      %p440 = scmp.ne.s32.totalorder %s432, %s435
      %p441 = scmp.eq.s32.totalorder %s35, 0
      %p442 = por %p440, %p441
      %p443 = scmp.ne.s32.totalorder %s432, %s435
      %p444 = scmp.eq.s32.totalorder %s40, 1
      %p445 = por %p443, %p444
      %p446 = scmp.ne.s32.totalorder %s435, %s436
      %p447 = scmp.eq.s32.totalorder %s40, 0
      %p448 = por %p446, %p447
      %p449 = scmp.ne.s32.totalorder %s435, %s436
      %p450 = scmp.eq.s32.totalorder %s41, 1
      %p451 = por %p449, %p450
      %p453 = scmp.ne.s32.totalorder %s436, %s452
      %p454 = scmp.eq.s32.totalorder %s41, 0
      %p455 = por %p453, %p454
      %s456 = ssub.s32 %s43, %s50
      %p457 = scmp.eq.s32.totalorder %s456, 0
      %s459 = sadd.s32 %s458, 1
      %s460 = scalar_select %p457, %s458, %s459
      %p463 = pneg %p457
      %p464 = scmp.eq.s32.totalorder %s35, 1
      %p465 = por %p463, %p464
      %p466 = scmp.ne.s32.totalorder %s458, %s461
      %p467 = scmp.eq.s32.totalorder %s35, 0
      %p468 = por %p466, %p467
      %p469 = scmp.ne.s32.totalorder %s458, %s461
      %p470 = scmp.eq.s32.totalorder %s40, 1
      %p471 = por %p469, %p470
      %p472 = scmp.ne.s32.totalorder %s461, %s462
      %p473 = scmp.eq.s32.totalorder %s40, 0
      %p474 = por %p472, %p473
      %p475 = scmp.ne.s32.totalorder %s461, %s462
      %p476 = scmp.eq.s32.totalorder %s41, 1
      %p477 = por %p475, %p476
      %p479 = scmp.ne.s32.totalorder %s462, %s478
      %p480 = scmp.eq.s32.totalorder %s41, 0
      %p481 = por %p479, %p480
      %s482 = ssub.s32 %s43, %s50
      %p483 = scmp.eq.s32.totalorder %s482, 0
      %s485 = sadd.s32 %s484, 1
      %s486 = scalar_select %p483, %s484, %s485
      %p489 = pneg %p483
      %p490 = scmp.eq.s32.totalorder %s35, 1
      %p491 = por %p489, %p490
      %p492 = scmp.ne.s32.totalorder %s484, %s487
      %p493 = scmp.eq.s32.totalorder %s35, 0
      %p494 = por %p492, %p493
      %p495 = scmp.ne.s32.totalorder %s484, %s487
      %p496 = scmp.eq.s32.totalorder %s40, 1
      %p497 = por %p495, %p496
      %p498 = scmp.ne.s32.totalorder %s487, %s488
      %p499 = scmp.eq.s32.totalorder %s40, 0
      %p500 = por %p498, %p499
      %p501 = scmp.ne.s32.totalorder %s487, %s488
      %p502 = scmp.eq.s32.totalorder %s41, 1
      %p503 = por %p501, %p502
      %p505 = scmp.ne.s32.totalorder %s488, %s504
      %p506 = scmp.eq.s32.totalorder %s41, 0
      %p507 = por %p505, %p506
      %s508 = ssub.s32 %s43, %s50
      %p509 = scmp.eq.s32.totalorder %s508, 0
      %s511 = sadd.s32 %s510, 1
      %s512 = scalar_select %p509, %s510, %s511
      %p515 = pneg %p509
      %p516 = scmp.eq.s32.totalorder %s35, 1
      %p517 = por %p515, %p516
      %p518 = scmp.ne.s32.totalorder %s510, %s513
      %p519 = scmp.eq.s32.totalorder %s35, 0
      %p520 = por %p518, %p519
      %p521 = scmp.ne.s32.totalorder %s510, %s513
      %p522 = scmp.eq.s32.totalorder %s40, 1
      %p523 = por %p521, %p522
      %p524 = scmp.ne.s32.totalorder %s513, %s514
      %p525 = scmp.eq.s32.totalorder %s40, 0
      %p526 = por %p524, %p525
      %p527 = scmp.ne.s32.totalorder %s513, %s514
      %p528 = scmp.eq.s32.totalorder %s41, 1
      %p529 = por %p527, %p528
      %p531 = scmp.ne.s32.totalorder %s514, %s530
      %p532 = scmp.eq.s32.totalorder %s41, 0
      %p533 = por %p531, %p532
      %s534 = ssub.s32 %s43, %s50
      %p535 = scmp.eq.s32.totalorder %s534, 0
      %s537 = sadd.s32 %s536, 1
      %s538 = scalar_select %p535, %s536, %s537
      %p541 = pneg %p535
      %p542 = scmp.eq.s32.totalorder %s35, 1
      %p543 = por %p541, %p542
      %p544 = scmp.ne.s32.totalorder %s536, %s539
      %p545 = scmp.eq.s32.totalorder %s35, 0
      %p546 = por %p544, %p545
      %p547 = scmp.ne.s32.totalorder %s536, %s539
      %p548 = scmp.eq.s32.totalorder %s40, 1
      %p549 = por %p547, %p548
      %p550 = scmp.ne.s32.totalorder %s539, %s540
      %p551 = scmp.eq.s32.totalorder %s40, 0
      %p552 = por %p550, %p551
      %p553 = scmp.ne.s32.totalorder %s539, %s540
      %p554 = scmp.eq.s32.totalorder %s41, 1
      %p555 = por %p553, %p554
      %p557 = scmp.ne.s32.totalorder %s540, %s556
      %p558 = scmp.eq.s32.totalorder %s41, 0
      %p559 = por %p557, %p558
      %s560 = ssub.s32 %s42, %s54
      %p561 = scmp.eq.s32.totalorder %s560, 0
      %s563 = sadd.s32 %s562, 1
      %s564 = scalar_select %p561, %s562, %s563
      %p567 = pneg %p561
      %p568 = scmp.eq.s32.totalorder %s35, 1
      %p569 = por %p567, %p568
      %p570 = scmp.ne.s32.totalorder %s562, %s565
      %p571 = scmp.eq.s32.totalorder %s35, 0
      %p572 = por %p570, %p571
      %p573 = scmp.ne.s32.totalorder %s562, %s565
      %p574 = scmp.eq.s32.totalorder %s40, 1
      %p575 = por %p573, %p574
      %p576 = scmp.ne.s32.totalorder %s565, %s566
      %p577 = scmp.eq.s32.totalorder %s40, 0
      %p578 = por %p576, %p577
      %p579 = scmp.ne.s32.totalorder %s565, %s566
      %p580 = scmp.eq.s32.totalorder %s41, 1
      %p581 = por %p579, %p580
      %p583 = scmp.ne.s32.totalorder %s566, %s582
      %p584 = scmp.eq.s32.totalorder %s41, 0
      %p585 = por %p583, %p584
      %p586 = scmp.le.s32.totalorder 1, %s35
      %p587 = scmp.lt.s32.totalorder %s35, 3
      %p588 = pnand %p586, %p587
      %p589 = pneg %p588
      // Predicated region
      $region9: #{tpu_custom_call.1} parent=5 // pred_check
        _
      $region10: #{tpu_custom_call.1} parent=5 // pred_check_branch
        %591 = sbr.rel (%p588) target = $region12
      $region11: #{tpu_custom_call.1} parent=5 // pred_region
        %s592 = ssub.s32 %s35, 1
        // Predicated region
        $region13: #{tpu_custom_call.1} parent=11 // pred_check
          %p593 = pneg %p73
        $region14: #{tpu_custom_call.1} parent=11 // pred_check_branch
          %595 = sbr.rel (%p593) target = $region16
        $region15: #{tpu_custom_call.1} parent=11 // pred_region
          %s596 = smul.u32 2, %s44
          %598 = vsyncadd [#allocation4], 0
          %s599 = smul.addr %s596, 8
          %s600 = scalar_lea.hbm %s0, %s599
          %s601 = sshll.u32 %s600, 4
          %s602 = int_to_ptr.hbm [resolvable:$true] %s601
          %s603 = sshll.u32 [#allocation3], 4
          %s604 = int_to_ptr.vmem [resolvable:$true] %s603
          %609 = dma.hbm_to_vmem [thread:$0]  %s602, 256, %s604, [#allocation4], 128, 128, 8
        $region16: #{tpu_custom_call.1} parent=11 // pred_fallthru
          _
        // Predicated region
        $region17: #{tpu_custom_call.1} parent=11 // pred_check
          %p610 = pneg %p94
        $region18: #{tpu_custom_call.1} parent=11 // pred_check_branch
          %612 = sbr.rel (%p610) target = $region20
        $region19: #{tpu_custom_call.1} parent=11 // pred_region
          %614 = vsyncadd [#allocation7], 0
          %s616 = sshll.u32 %s1, 4
          %s617 = int_to_ptr.hbm [resolvable:$true] %s616
          %s618 = sshll.u32 [#allocation6], 4
          %s619 = int_to_ptr.vmem [resolvable:$true] %s618
          %621 = dma.hbm_to_vmem [thread:$0]  %s617, 128, %s619, [#allocation7]
        $region20: #{tpu_custom_call.1} parent=11 // pred_fallthru
          _
        // Predicated region
        $region21: #{tpu_custom_call.1} parent=11 // pred_check
          %p622 = pneg %p115
        $region22: #{tpu_custom_call.1} parent=11 // pred_check_branch
          %624 = sbr.rel (%p622) target = $region24
        $region23: #{tpu_custom_call.1} parent=11 // pred_region
          _
        $region24: #{tpu_custom_call.1} parent=11 // pred_fallthru
          _
        // Predicated region
        $region25: #{tpu_custom_call.1} parent=11 // pred_check
          %p625 = pneg %p136
        $region26: #{tpu_custom_call.1} parent=11 // pred_check_branch
          %627 = sbr.rel (%p625) target = $region28
        $region27: #{tpu_custom_call.1} parent=11 // pred_region
          %629 = vsyncadd [#allocation7], 0
          %s631 = sshll.u32 %s3, 4
          %s632 = int_to_ptr.hbm [resolvable:$true] %s631
          %s633 = sshll.u32 [#allocation8], 4
          %s634 = int_to_ptr.vmem [resolvable:$true] %s633
          %636 = dma.hbm_to_vmem [thread:$0]  %s632, 16, %s634, [#allocation7]
        $region28: #{tpu_custom_call.1} parent=11 // pred_fallthru
          _
      $region12: #{tpu_custom_call.1} parent=5 // pred_fallthru
        _
      %p637 = scmp.lt.s32.totalorder %s35, 2
      // Predicated region
      $region29: #{tpu_custom_call.1} parent=5 // pred_check
        %p638 = pneg %p637
      $region30: #{tpu_custom_call.1} parent=5 // pred_check_branch
        %640 = sbr.rel (%p638) target = $region32
      $region31: #{tpu_custom_call.1} parent=5 // pred_region
        // Predicated region
        $region33: #{tpu_custom_call.1} parent=31 // pred_check
          %p641 = pneg %p156
        $region34: #{tpu_custom_call.1} parent=31 // pred_check_branch
          %643 = sbr.rel (%p641) target = $region36
        $region35: #{tpu_custom_call.1} parent=31 // pred_region
          %p644 = scmp.lt.s32.totalorder %s43, 1
          %s645 = scalar_select %p644, %s43, 1
          %s646 = scalar_lea.vmem %s4, %s645
        $region36: #{tpu_custom_call.1} parent=31 // pred_fallthru
          _
        // Predicated region
        $region37: #{tpu_custom_call.1} parent=31 // pred_check
          %p647 = pneg %p182
        $region38: #{tpu_custom_call.1} parent=31 // pred_check_branch
          %649 = sbr.rel (%p647) target = $region40
        $region39: #{tpu_custom_call.1} parent=31 // pred_region
          %s650 = sand.u32 %s35, 1
          %s651 = scalar_lea.sflag [#allocation10], %s650
          %s652 = sand.u32 %s172, 1
          %s653 = scalar_lea.vmem [#allocation9], %s652
          %655 = vsyncadd %s651, 0
          %s656 = scalar_lea.hbm %s5, %s43
          %s658 = sshll.u32 %s656, 4
          %s659 = int_to_ptr.hbm [resolvable:$true] %s658
          %s660 = sshll.u32 %s653, 4
          %s661 = int_to_ptr.vmem [resolvable:$true] %s660
          %663 = dma.hbm_to_vmem [thread:$0]  %s659, 16, %s661, %s651
        $region40: #{tpu_custom_call.1} parent=31 // pred_fallthru
          _
        // Predicated region
        $region41: #{tpu_custom_call.1} parent=31 // pred_check
          %p664 = pneg %p208
        $region42: #{tpu_custom_call.1} parent=31 // pred_check_branch
          %666 = sbr.rel (%p664) target = $region44
        $region43: #{tpu_custom_call.1} parent=31 // pred_region
          %p667 = scmp.lt.s32.totalorder %s43, 1
          %s668 = scalar_select %p667, %s43, 1
          %s669 = smul.addr %s668, 4
          %s670 = smul.addr %s669, 4
          %s671 = scalar_lea.vmem %s6, %s670
        $region44: #{tpu_custom_call.1} parent=31 // pred_fallthru
          _
        // Predicated region
        $region45: #{tpu_custom_call.1} parent=31 // pred_check
          %p672 = pneg %p234
        $region46: #{tpu_custom_call.1} parent=31 // pred_check_branch
          %674 = sbr.rel (%p672) target = $region48
        $region47: #{tpu_custom_call.1} parent=31 // pred_region
          %p675 = scmp.lt.s32.totalorder %s43, 1
          %s676 = scalar_select %p675, %s43, 1
          %s677 = scalar_lea.vmem %s7, %s676
        $region48: #{tpu_custom_call.1} parent=31 // pred_fallthru
          _
        // Predicated region
        $region49: #{tpu_custom_call.1} parent=31 // pred_check
          %p678 = pneg %p260
        $region50: #{tpu_custom_call.1} parent=31 // pred_check_branch
          %680 = sbr.rel (%p678) target = $region52
        $region51: #{tpu_custom_call.1} parent=31 // pred_region
          %p681 = scmp.lt.s32.totalorder %s43, 1
          %s682 = scalar_select %p681, %s43, 1
          %s683 = smul.addr %s682, 4
          %s684 = smul.addr %s683, 4
          %s685 = scalar_lea.vmem %s8, %s684
        $region52: #{tpu_custom_call.1} parent=31 // pred_fallthru
          _
        // Predicated region
        $region53: #{tpu_custom_call.1} parent=31 // pred_check
          %p686 = pneg %p286
        $region54: #{tpu_custom_call.1} parent=31 // pred_check_branch
          %688 = sbr.rel (%p686) target = $region56
        $region55: #{tpu_custom_call.1} parent=31 // pred_region
          %p689 = scmp.lt.s32.totalorder %s43, 1
          %s690 = scalar_select %p689, %s43, 1
          %s691 = scalar_lea.vmem %s9, %s690
        $region56: #{tpu_custom_call.1} parent=31 // pred_fallthru
          _
        // Predicated region
        $region57: #{tpu_custom_call.1} parent=31 // pred_check
          %p692 = pneg %p312
        $region58: #{tpu_custom_call.1} parent=31 // pred_check_branch
          %694 = sbr.rel (%p692) target = $region60
        $region59: #{tpu_custom_call.1} parent=31 // pred_region
          %p695 = scmp.lt.s32.totalorder %s43, 1
          %s696 = scalar_select %p695, %s43, 1
          %s697 = smul.addr %s696, 4
          %s698 = smul.addr %s697, 4
          %s699 = scalar_lea.vmem %s10, %s698
        $region60: #{tpu_custom_call.1} parent=31 // pred_fallthru
          _
        // Predicated region
        $region61: #{tpu_custom_call.1} parent=31 // pred_check
          %p700 = pneg %p338
        $region62: #{tpu_custom_call.1} parent=31 // pred_check_branch
          %702 = sbr.rel (%p700) target = $region64
        $region63: #{tpu_custom_call.1} parent=31 // pred_region
          %p703 = scmp.lt.s32.totalorder %s43, 1
          %s704 = scalar_select %p703, %s43, 1
          %s705 = scalar_lea.vmem %s11, %s704
        $region64: #{tpu_custom_call.1} parent=31 // pred_fallthru
          _
        // Predicated region
        $region65: #{tpu_custom_call.1} parent=31 // pred_check
          %p706 = pneg %p364
        $region66: #{tpu_custom_call.1} parent=31 // pred_check_branch
          %708 = sbr.rel (%p706) target = $region68
        $region67: #{tpu_custom_call.1} parent=31 // pred_region
          %s709 = sand.u32 %s35, 1
          %s710 = scalar_lea.sflag [#allocation10], %s709
          %s711 = sand.u32 %s354, 1
          %s712 = smul.addr %s711, 16
          %s713 = scalar_lea.vmem [#allocation11], %s712
          %715 = vsyncadd %s710, 0
          %s716 = smul.addr %s43, 4
          %s717 = smul.addr %s716, 4
          %s718 = scalar_lea.hbm %s12, %s717
          %s719 = sshll.u32 %s718, 4
          %s720 = int_to_ptr.hbm [resolvable:$true] %s719
          %s721 = sshll.u32 %s713, 4
          %s722 = int_to_ptr.vmem [resolvable:$true] %s721
          %727 = dma.hbm_to_vmem [thread:$0]  %s720, 256, %s722, %s710, 64, 64, 4
        $region68: #{tpu_custom_call.1} parent=31 // pred_fallthru
          _
        // Predicated region
        $region69: #{tpu_custom_call.1} parent=31 // pred_check
          %p728 = pneg %p390
        $region70: #{tpu_custom_call.1} parent=31 // pred_check_branch
          %730 = sbr.rel (%p728) target = $region72
        $region71: #{tpu_custom_call.1} parent=31 // pred_region
          %p731 = scmp.lt.s32.totalorder %s43, 1
          %s732 = scalar_select %p731, %s43, 1
          %s733 = scalar_lea.vmem %s13, %s732
        $region72: #{tpu_custom_call.1} parent=31 // pred_fallthru
          _
        // Predicated region
        $region73: #{tpu_custom_call.1} parent=31 // pred_check
          %p734 = pneg %p416
        $region74: #{tpu_custom_call.1} parent=31 // pred_check_branch
          %736 = sbr.rel (%p734) target = $region76
        $region75: #{tpu_custom_call.1} parent=31 // pred_region
          %p737 = scmp.lt.s32.totalorder %s43, 1
          %s738 = scalar_select %p737, %s43, 1
          %s739 = scalar_lea.vmem %s14, %s738
        $region76: #{tpu_custom_call.1} parent=31 // pred_fallthru
          _
        // Predicated region
        $region77: #{tpu_custom_call.1} parent=31 // pred_check
          %p740 = pneg %p442
        $region78: #{tpu_custom_call.1} parent=31 // pred_check_branch
          %742 = sbr.rel (%p740) target = $region80
        $region79: #{tpu_custom_call.1} parent=31 // pred_region
          %s743 = sand.u32 %s35, 1
          %s744 = scalar_lea.sflag [#allocation13], %s743
          %s745 = sand.u32 %s432, 1
          %s746 = scalar_lea.vmem [#allocation12], %s745
          %748 = vsyncadd %s744, 0
          %s749 = scalar_lea.hbm %s15, %s43
          %s751 = sshll.u32 %s749, 4
          %s752 = int_to_ptr.hbm [resolvable:$true] %s751
          %s753 = sshll.u32 %s746, 4
          %s754 = int_to_ptr.vmem [resolvable:$true] %s753
          %756 = dma.hbm_to_vmem [thread:$0]  %s752, 16, %s754, %s744
        $region80: #{tpu_custom_call.1} parent=31 // pred_fallthru
          _
        // Predicated region
        $region81: #{tpu_custom_call.1} parent=31 // pred_check
          %p757 = pneg %p468
        $region82: #{tpu_custom_call.1} parent=31 // pred_check_branch
          %759 = sbr.rel (%p757) target = $region84
        $region83: #{tpu_custom_call.1} parent=31 // pred_region
          %s760 = sand.u32 %s35, 1
          %s761 = scalar_lea.sflag [#allocation13], %s760
          %s762 = sand.u32 %s458, 1
          %s763 = smul.addr %s762, 16
          %s764 = scalar_lea.vmem [#allocation14], %s763
          %766 = vsyncadd %s761, 0
          %s767 = smul.addr %s43, 4
          %s768 = smul.addr %s767, 4
          %s769 = scalar_lea.hbm %s16, %s768
          %s770 = sshll.u32 %s769, 4
          %s771 = int_to_ptr.hbm [resolvable:$true] %s770
          %s772 = sshll.u32 %s764, 4
          %s773 = int_to_ptr.vmem [resolvable:$true] %s772
          %778 = dma.hbm_to_vmem [thread:$0]  %s771, 256, %s773, %s761, 64, 64, 4
        $region84: #{tpu_custom_call.1} parent=31 // pred_fallthru
          _
        // Predicated region
        $region85: #{tpu_custom_call.1} parent=31 // pred_check
          %p779 = pneg %p494
        $region86: #{tpu_custom_call.1} parent=31 // pred_check_branch
          %781 = sbr.rel (%p779) target = $region88
        $region87: #{tpu_custom_call.1} parent=31 // pred_region
          %p782 = scmp.lt.s32.totalorder %s43, 1
          %s783 = scalar_select %p782, %s43, 1
          %s784 = scalar_lea.vmem %s17, %s783
        $region88: #{tpu_custom_call.1} parent=31 // pred_fallthru
          _
        // Predicated region
        $region89: #{tpu_custom_call.1} parent=31 // pred_check
          %p785 = pneg %p520
        $region90: #{tpu_custom_call.1} parent=31 // pred_check_branch
          %787 = sbr.rel (%p785) target = $region92
        $region91: #{tpu_custom_call.1} parent=31 // pred_region
          %p788 = scmp.lt.s32.totalorder %s43, 1
          %s789 = scalar_select %p788, %s43, 1
          %s790 = smul.addr %s789, 8
          %s791 = smul.addr %s790, 4
          %s792 = scalar_lea.vmem %s18, %s791
        $region92: #{tpu_custom_call.1} parent=31 // pred_fallthru
          _
        // Predicated region
        $region93: #{tpu_custom_call.1} parent=31 // pred_check
          %p793 = pneg %p546
        $region94: #{tpu_custom_call.1} parent=31 // pred_check_branch
          %795 = sbr.rel (%p793) target = $region96
        $region95: #{tpu_custom_call.1} parent=31 // pred_region
          %p796 = scmp.lt.s32.totalorder %s43, 1
          %s797 = scalar_select %p796, %s43, 1
          %s798 = scalar_lea.vmem %s19, %s797
        $region96: #{tpu_custom_call.1} parent=31 // pred_fallthru
          _
      $region32: #{tpu_custom_call.1} parent=5 // pred_fallthru
        _
      %p799 = scmp.le.s32.totalorder 1, %s35
      %p800 = scmp.lt.s32.totalorder %s35, 3
      %p801 = pnand %p799, %p800
      %p802 = pneg %p801
      // Predicated region
      $region97: #{tpu_custom_call.1} parent=5 // pred_check
        _
      $region98: #{tpu_custom_call.1} parent=5 // pred_check_branch
        %804 = sbr.rel (%p801) target = $region100
      $region99: #{tpu_custom_call.1} parent=5 // pred_region
        %s805 = ssub.s32 %s35, 1
        // Predicated region
        $region101: #{tpu_custom_call.1} parent=99 // pred_check
          %p806 = pneg %p73
        $region102: #{tpu_custom_call.1} parent=99 // pred_check_branch
          %808 = sbr.rel (%p806) target = $region104
        $region103: #{tpu_custom_call.1} parent=99 // pred_region
          %810 = dma.done [#allocation4], 256
        $region104: #{tpu_custom_call.1} parent=99 // pred_fallthru
          _
        // Predicated region
        $region105: #{tpu_custom_call.1} parent=99 // pred_check
          %p811 = pneg %p94
        $region106: #{tpu_custom_call.1} parent=99 // pred_check_branch
          %813 = sbr.rel (%p811) target = $region108
        $region107: #{tpu_custom_call.1} parent=99 // pred_region
          %815 = dma.done [#allocation7], 128
        $region108: #{tpu_custom_call.1} parent=99 // pred_fallthru
          _
        // Predicated region
        $region109: #{tpu_custom_call.1} parent=99 // pred_check
          %p816 = pneg %p136
        $region110: #{tpu_custom_call.1} parent=99 // pred_check_branch
          %818 = sbr.rel (%p816) target = $region112
        $region111: #{tpu_custom_call.1} parent=99 // pred_region
          %820 = dma.done [#allocation7], 16
        $region112: #{tpu_custom_call.1} parent=99 // pred_fallthru
          _
        %s821 = sand.u32 %s40, 1
        %s822 = scalar_lea.sflag [#allocation10], %s821
        %s823 = sand.u32 %s175, 1
        %s824 = scalar_lea.vmem [#allocation9], %s823
        // Predicated region
        $region113: #{tpu_custom_call.1} parent=99 // pred_check
          %p825 = pneg %p188
        $region114: #{tpu_custom_call.1} parent=99 // pred_check_branch
          %827 = sbr.rel (%p825) target = $region116
        $region115: #{tpu_custom_call.1} parent=99 // pred_region
          %829 = dma.done %s822, 16
        $region116: #{tpu_custom_call.1} parent=99 // pred_fallthru
          _
        %s830 = sand.u32 %s40, 1
        %s831 = scalar_lea.sflag [#allocation10], %s830
        %s832 = sand.u32 %s357, 1
        %s833 = smul.addr %s832, 16
        %s834 = scalar_lea.vmem [#allocation11], %s833
        // Predicated region
        $region117: #{tpu_custom_call.1} parent=99 // pred_check
          %p835 = pneg %p370
        $region118: #{tpu_custom_call.1} parent=99 // pred_check_branch
          %837 = sbr.rel (%p835) target = $region120
        $region119: #{tpu_custom_call.1} parent=99 // pred_region
          %839 = dma.done %s831, 256
        $region120: #{tpu_custom_call.1} parent=99 // pred_fallthru
          _
        %s840 = sand.u32 %s40, 1
        %s841 = scalar_lea.sflag [#allocation13], %s840
        %s842 = sand.u32 %s435, 1
        %s843 = scalar_lea.vmem [#allocation12], %s842
        // Predicated region
        $region121: #{tpu_custom_call.1} parent=99 // pred_check
          %p844 = pneg %p448
        $region122: #{tpu_custom_call.1} parent=99 // pred_check_branch
          %846 = sbr.rel (%p844) target = $region124
        $region123: #{tpu_custom_call.1} parent=99 // pred_region
          %848 = dma.done %s841, 16
        $region124: #{tpu_custom_call.1} parent=99 // pred_fallthru
          _
        %s849 = sand.u32 %s40, 1
        %s850 = scalar_lea.sflag [#allocation13], %s849
        %s851 = sand.u32 %s461, 1
        %s852 = smul.addr %s851, 16
        %s853 = scalar_lea.vmem [#allocation14], %s852
        // Predicated region
        $region125: #{tpu_custom_call.1} parent=99 // pred_check
          %p854 = pneg %p474
        $region126: #{tpu_custom_call.1} parent=99 // pred_check_branch
          %856 = sbr.rel (%p854) target = $region128
        $region127: #{tpu_custom_call.1} parent=99 // pred_region
          %858 = dma.done %s850, 256
        $region128: #{tpu_custom_call.1} parent=99 // pred_fallthru
          _
        %p859 = pneg %p73
        %p860 = pneg %p70
        %p861 = pneg %p94
        %p862 = pneg %p91
        %p863 = pneg %p115
        %p864 = pneg %p112
        %p865 = pneg %p136
        %p866 = pneg %p133
        %p867 = scmp.lt.s32.totalorder %s45, 1
        %s868 = scalar_select %p867, %s45, 1
        %s869 = scalar_lea.vmem %s4, %s868
        %p870 = pneg %p162
        %p871 = pneg %p159
        %s872 = sand.u32 %s40, 1
        %s873 = scalar_lea.sflag [#allocation10], %s872
        %s874 = sand.u32 %s175, 1
        %s875 = scalar_lea.vmem [#allocation9], %s874
        %p876 = pneg %p188
        %p877 = pneg %p185
        %p878 = scmp.lt.s32.totalorder %s45, 1
        %s879 = scalar_select %p878, %s45, 1
        %s880 = smul.addr %s879, 4
        %s881 = smul.addr %s880, 4
        %s882 = scalar_lea.vmem %s6, %s881
        %p883 = pneg %p214
        %p884 = pneg %p211
        %p885 = scmp.lt.s32.totalorder %s45, 1
        %s886 = scalar_select %p885, %s45, 1
        %s887 = scalar_lea.vmem %s7, %s886
        %p888 = pneg %p240
        %p889 = pneg %p237
        %p890 = scmp.lt.s32.totalorder %s45, 1
        %s891 = scalar_select %p890, %s45, 1
        %s892 = smul.addr %s891, 4
        %s893 = smul.addr %s892, 4
        %s894 = scalar_lea.vmem %s8, %s893
        %p895 = pneg %p266
        %p896 = pneg %p263
        %p897 = scmp.lt.s32.totalorder %s45, 1
        %s898 = scalar_select %p897, %s45, 1
        %s899 = scalar_lea.vmem %s9, %s898
        %p900 = pneg %p292
        %p901 = pneg %p289
        %p902 = scmp.lt.s32.totalorder %s45, 1
        %s903 = scalar_select %p902, %s45, 1
        %s904 = smul.addr %s903, 4
        %s905 = smul.addr %s904, 4
        %s906 = scalar_lea.vmem %s10, %s905
        %p907 = pneg %p318
        %p908 = pneg %p315
        %p909 = scmp.lt.s32.totalorder %s45, 1
        %s910 = scalar_select %p909, %s45, 1
        %s911 = scalar_lea.vmem %s11, %s910
        %p912 = pneg %p344
        %p913 = pneg %p341
        %s914 = sand.u32 %s40, 1
        %s915 = scalar_lea.sflag [#allocation10], %s914
        %s916 = sand.u32 %s357, 1
        %s917 = smul.addr %s916, 16
        %s918 = scalar_lea.vmem [#allocation11], %s917
        %p919 = pneg %p370
        %p920 = pneg %p367
        %p921 = scmp.lt.s32.totalorder %s45, 1
        %s922 = scalar_select %p921, %s45, 1
        %s923 = scalar_lea.vmem %s13, %s922
        %p924 = pneg %p396
        %p925 = pneg %p393
        %p926 = scmp.lt.s32.totalorder %s45, 1
        %s927 = scalar_select %p926, %s45, 1
        %s928 = scalar_lea.vmem %s14, %s927
        %p929 = pneg %p422
        %p930 = pneg %p419
        %s931 = sand.u32 %s40, 1
        %s932 = scalar_lea.sflag [#allocation13], %s931
        %s933 = sand.u32 %s435, 1
        %s934 = scalar_lea.vmem [#allocation12], %s933
        %p935 = pneg %p448
        %p936 = pneg %p445
        %s937 = sand.u32 %s40, 1
        %s938 = scalar_lea.sflag [#allocation13], %s937
        %s939 = sand.u32 %s461, 1
        %s940 = smul.addr %s939, 16
        %s941 = scalar_lea.vmem [#allocation14], %s940
        %p942 = pneg %p474
        %p943 = pneg %p471
        %p944 = scmp.lt.s32.totalorder %s45, 1
        %s945 = scalar_select %p944, %s45, 1
        %s946 = scalar_lea.vmem %s17, %s945
        %p947 = pneg %p500
        %p948 = pneg %p497
        %p949 = scmp.lt.s32.totalorder %s45, 1
        %s950 = scalar_select %p949, %s45, 1
        %s951 = smul.addr %s950, 8
        %s952 = smul.addr %s951, 4
        %s953 = scalar_lea.vmem %s18, %s952
        %p954 = pneg %p526
        %p955 = pneg %p523
        %p956 = scmp.lt.s32.totalorder %s45, 1
        %s957 = scalar_select %p956, %s45, 1
        %s958 = scalar_lea.vmem %s19, %s957
        %p959 = pneg %p552
        %p960 = pneg %p549
        %p961 = pneg %p578
        %p962 = pneg %p575
        %s963 = smul.u32 2, %s44
        %p964 = scmp.lt.s32.totalorder %s45, 1
        %s965 = scalar_select %p964, %s45, 1
        %s966 = scalar_lea.vmem %s4, %s965
        %p967 = scmp.lt.s32.totalorder %s45, 1
        %s968 = scalar_select %p967, %s45, 1
        %s969 = smul.addr %s968, 4
        %s970 = smul.addr %s969, 4
        %s971 = scalar_lea.vmem %s6, %s970
        %p972 = scmp.lt.s32.totalorder %s45, 1
        %s973 = scalar_select %p972, %s45, 1
        %s974 = scalar_lea.vmem %s7, %s973
        %p975 = scmp.lt.s32.totalorder %s45, 1
        %s976 = scalar_select %p975, %s45, 1
        %s977 = smul.addr %s976, 4
        %s978 = smul.addr %s977, 4
        %s979 = scalar_lea.vmem %s8, %s978
        %p980 = scmp.lt.s32.totalorder %s45, 1
        %s981 = scalar_select %p980, %s45, 1
        %s982 = scalar_lea.vmem %s9, %s981
        %p983 = scmp.lt.s32.totalorder %s45, 1
        %s984 = scalar_select %p983, %s45, 1
        %s985 = smul.addr %s984, 4
        %s986 = smul.addr %s985, 4
        %s987 = scalar_lea.vmem %s10, %s986
        %p988 = scmp.lt.s32.totalorder %s45, 1
        %s989 = scalar_select %p988, %s45, 1
        %s990 = scalar_lea.vmem %s11, %s989
        %p991 = scmp.lt.s32.totalorder %s45, 1
        %s992 = scalar_select %p991, %s45, 1
        %s993 = scalar_lea.vmem %s13, %s992
        %p994 = scmp.lt.s32.totalorder %s45, 1
        %s995 = scalar_select %p994, %s45, 1
        %s996 = scalar_lea.vmem %s14, %s995
        %p997 = scmp.lt.s32.totalorder %s45, 1
        %s998 = scalar_select %p997, %s45, 1
        %s999 = scalar_lea.vmem %s17, %s998
        %p1000 = scmp.lt.s32.totalorder %s45, 1
        %s1001 = scalar_select %p1000, %s45, 1
        %s1002 = smul.addr %s1001, 8
        %s1003 = smul.addr %s1002, 4
        %s1004 = scalar_lea.vmem %s18, %s1003
        %p1005 = scmp.lt.s32.totalorder %s45, 1
        %s1006 = scalar_select %p1005, %s45, 1
        %s1007 = scalar_lea.vmem %s19, %s1006
        %s1008 = smul.u32 2, %s44
        %p1010 = scmp.eq.s32.totalorder %s45, 0
        // Predicated region
        $region129: #{tpu_custom_call.1} parent=99 // pred_check
          %p1011 = pneg %p1010
        $region130: #{tpu_custom_call.1} parent=99 // pred_check_branch
          %1013 = sbr.rel (%p1011) target = $region132
        $region131: #{tpu_custom_call.1} parent=99 // pred_region
          %v1014 = vld [vmem:[#allocation3] sm:$0xff]
          %v1015 = vld [vmem:[#allocation3 + $0x8] sm:$0xff]
          %v1016 = vld [vmem:[#allocation6] sm:$0xff]
          %v1017 = vadd.f32 %v1014, %v1016
          %v1018 = vadd.f32 %v1015, %v1016
          %vm1019 = vcmask 261120
          %1020 = vst.msk [vmem:[#allocation2] sm:$0xff] %vm1019, %v1017
          %1021 = vst.msk [vmem:[#allocation2 + $0x8] sm:$0xff] %vm1019, %v1018
        $region132: #{tpu_custom_call.1} parent=99 // pred_fallthru
          _
        %v1022 = vld [vmem:[#allocation2] sm:$0xff]
        %v1023 = vld [vmem:[#allocation2 + $0x8] sm:$0xff]
        %v1024 = vld [vmem:[%s966] sm:$0x1]
        %v1025 = vld [vmem:[%s824] sm:$0x1]
        %vm1026 = vcmask 261120
        %v1027 = vsel %vm1026, %v1022, 0.0
        %1028 = vadd.xlane.f32.xlu0 %v1027
        %v1029 = vpop.xlane.xlu0 %1028
        %v1030 = vsel %vm1026, %v1023, 0.0
        %1031 = vadd.xlane.f32.xlu0 %v1030
        %v1032 = vpop.xlane.xlu0 %1031
        %v1033 = vrcp.pop 32.0
        %v1034 = vmul.f32 32.0, %v1033
        %v1035 = vsub.f32 1.0, %v1034
        %v1036 = vmul.f32 %v1033, %v1035
        %v1037 = vadd.f32 %v1033, %v1036
        %vm1038 = vweird.f32 %v1033
        %v1039 = vsel %vm1038, %v1033, %v1037
        %v1040 = vmul.f32 %v1029, %v1039
        %v1041 = vmul.f32 %v1032, %v1039
        %v1042 = vsub.f32 %v1022, %v1040
        %v1043 = vsub.f32 %v1023, %v1041
        %v1044 = vmul.f32 %v1042, %v1042
        %v1045 = vmul.f32 %v1043, %v1043
        %v1046 = vsel %vm1026, %v1044, 0.0
        %1047 = vadd.xlane.f32.xlu0 %v1046
        %v1048 = vpop.xlane.xlu0 %1047
        %v1049 = vsel %vm1026, %v1045, 0.0
        %1050 = vadd.xlane.f32.xlu0 %v1049
        %v1051 = vpop.xlane.xlu0 %1050
        %v1052 = vmul.f32 %v1048, %v1039
        %v1053 = vmul.f32 %v1051, %v1039
        %v1054 = vadd.f32 %v1052, 1e-05
        %v1055 = vadd.f32 %v1053, 1e-05
        %v1056 = vrsqrt.pop %v1054
        %v1057 = vmul.f32 %v1056, %v1054
        %v1058 = vmul.f32 %v1057, %v1056
        %v1059 = vmul.f32 0.5, %v1058
        %v1060 = vsub.f32 1.5, %v1059
        %v1061 = vmul.f32 %v1056, %v1060
        %vm1062 = vweird.f32 %v1054
        %vm1063 = vweird.f32 %v1056
        %vm1064 = vmor %vm1062, %vm1063
        %v1065 = vsel %vm1064, %v1056, %v1061
        %v1066 = vrsqrt.pop %v1055
        %v1067 = vmul.f32 %v1066, %v1055
        %v1068 = vmul.f32 %v1067, %v1066
        %v1069 = vmul.f32 0.5, %v1068
        %v1070 = vsub.f32 1.5, %v1069
        %v1071 = vmul.f32 %v1066, %v1070
        %vm1072 = vweird.f32 %v1055
        %vm1073 = vweird.f32 %v1066
        %vm1074 = vmor %vm1072, %vm1073
        %v1075 = vsel %vm1074, %v1066, %v1071
        %v1076 = vmul.f32 %v1042, %v1065
        %v1077 = vmul.f32 %v1043, %v1075
        %v1079 = vperm.slane %v1024, 0
        %v1081 = vmul.f32 %v1076, %v1079
        %v1082 = vmul.f32 %v1077, %v1079
        %v1084 = vperm.slane %v1025, 0
        %v1086 = vadd.f32 %v1081, %v1084
        %v1087 = vadd.f32 %v1082, %v1084
        %v1088 = vpack.c.bf16 %v1087, %v1086
        %v1089 = vld [vmem:[%s971] sm:$0xf]
        %v1090 = vld [vmem:[%s971 + $0x4] sm:$0xf]
        %v1091 = vld [vmem:[%s971 + $0x8] sm:$0xf]
        %v1092 = vld [vmem:[%s971 + $0xc] sm:$0xf]
        %v1093 = vld [vmem:[%s974] sm:$0x1]
        %v1095 = vperm.slane %v1093, 0
        %v1101 = vunpack.c.l.b16 %v1089
        %v1102 = vunpack.c.l.b16 %v1090
        %v1103 = vunpack.c.l.b16 %v1091
        %v1104 = vunpack.c.l.b16 %v1092
        %v1105 = vpack.c.b16 %v1102, %v1101
        %v1106 = vpack.c.b16 %v1104, %v1103
        %v1110 = vsel %vm1026, %v1088, 0
        %1112 = vmatpush.bf16.msra.mxu0 0
        %1113 = vmatpush.bf16.msra.mxu0 0
        %1114 = vmatpush.bf16.msra.mxu0 0
        %1115 = vmatpush.bf16.msra.mxu0 0
        %1116 = vmatpush.bf16.msra.mxu0 0
        %1117 = vmatpush.bf16.msra.mxu0 0
        %1118 = vmatpush.bf16.msra.mxu0 %v1106
        %1119 = vmatpush.bf16.msra.mxu0 %v1105
        %1120 = vmatmul.bf16.gmra.mxu0 %v1110
        %v1121 = vpop.f32.mrf.mxu0
        %v1122 = vadd.f32 %v1095, %v1121
        %v1123 = vpop.f32.mrf.mxu0
        %v1124 = vadd.f32 %v1095, %v1123
        %1125 = vdwg.mxu0
        %v1126 = vld [vmem:[%s979] sm:$0xf]
        %v1127 = vld [vmem:[%s979 + $0x4] sm:$0xf]
        %v1128 = vld [vmem:[%s979 + $0x8] sm:$0xf]
        %v1129 = vld [vmem:[%s979 + $0xc] sm:$0xf]
        %v1130 = vld [vmem:[%s982] sm:$0x1]
        %v1132 = vperm.slane %v1130, 0
        %v1138 = vunpack.c.l.b16 %v1126
        %v1139 = vunpack.c.l.b16 %v1127
        %v1140 = vunpack.c.l.b16 %v1128
        %v1141 = vunpack.c.l.b16 %v1129
        %v1142 = vpack.c.b16 %v1139, %v1138
        %v1143 = vpack.c.b16 %v1141, %v1140
        %1146 = vmatpush.bf16.msra.mxu0 0
        %1147 = vmatpush.bf16.msra.mxu0 0
        %1148 = vmatpush.bf16.msra.mxu0 0
        %1149 = vmatpush.bf16.msra.mxu0 0
        %1150 = vmatpush.bf16.msra.mxu0 0
        %1151 = vmatpush.bf16.msra.mxu0 0
        %1152 = vmatpush.bf16.msra.mxu0 %v1143
        %1153 = vmatpush.bf16.msra.mxu0 %v1142
        %1154 = vmatmul.bf16.gmra.mxu0 %v1110
        %v1155 = vpop.f32.mrf.mxu0
        %v1156 = vadd.f32 %v1132, %v1155
        %v1157 = vpop.f32.mrf.mxu0
        %v1158 = vadd.f32 %v1132, %v1157
        %1159 = vdwg.mxu0
        %v1160 = vld [vmem:[%s987] sm:$0xf]
        %v1161 = vld [vmem:[%s987 + $0x4] sm:$0xf]
        %v1162 = vld [vmem:[%s987 + $0x8] sm:$0xf]
        %v1163 = vld [vmem:[%s987 + $0xc] sm:$0xf]
        %v1164 = vld [vmem:[%s990] sm:$0x1]
        %v1166 = vperm.slane %v1164, 0
        %v1172 = vunpack.c.l.b16 %v1160
        %v1173 = vunpack.c.l.b16 %v1161
        %v1174 = vunpack.c.l.b16 %v1162
        %v1175 = vunpack.c.l.b16 %v1163
        %v1176 = vpack.c.b16 %v1173, %v1172
        %v1177 = vpack.c.b16 %v1175, %v1174
        %1180 = vmatpush.bf16.msra.mxu0 0
        %1181 = vmatpush.bf16.msra.mxu0 0
        %1182 = vmatpush.bf16.msra.mxu0 0
        %1183 = vmatpush.bf16.msra.mxu0 0
        %1184 = vmatpush.bf16.msra.mxu0 0
        %1185 = vmatpush.bf16.msra.mxu0 0
        %1186 = vmatpush.bf16.msra.mxu0 %v1177
        %1187 = vmatpush.bf16.msra.mxu0 %v1176
        %1188 = vmatmul.bf16.gmra.mxu0 %v1110
        %v1189 = vpop.f32.mrf.mxu0
        %v1190 = vadd.f32 %v1166, %v1189
        %v1191 = vpop.f32.mrf.mxu0
        %v1192 = vadd.f32 %v1166, %v1191
        %1193 = vdwg.mxu0
        %v1194 = vmul.f32 %v1122, 0.35355338
        %v1195 = vmul.f32 %v1124, 0.35355338
        %v1196 = vpack.c.bf16 %v1194, %v1194
        %v1197 = vpack.c.bf16 %v1195, %v1195
        %v1198 = vpack.c.bf16 %v1156, %v1156
        %v1199 = vpack.c.bf16 %v1158, %v1158
        %v1200 = vpack.c.bf16 %v1190, %v1190
        %v1201 = vpack.c.bf16 %v1192, %v1192
        %vm1202 = vcmask 64512
        %v1204 = vsel %vm1202, %v1196, 0
        %v1207 = vsel %vm1202, %v1198, 0
        %1209 = vmatpush.bf16.xpose.msra.mxu0 0
        %1210 = vmatpush.bf16.xpose.msra.mxu0 0
        %1211 = vmatpush.bf16.xpose.msra.mxu0 0
        %1212 = vmatpush.bf16.xpose.msra.mxu0 0
        %1213 = vmatpush.bf16.xpose.msra.mxu0 0
        %1214 = vmatpush.bf16.xpose.msra.mxu0 0
        %1215 = vmatpush.bf16.xpose.msra.mxu0 0
        %1216 = vmatpush.bf16.xpose.msra.mxu0 %v1207
        %1217 = vmatmul.bf16.gmra.mxu0 %v1204
        %v1218 = vpop.f32.mrf.mxu0
        %v1219 = vadd.f32 0.0, %v1218
        %v1220 = vpop.f32.mrf.mxu0
        %1221 = vdwg.mxu0
        %v1223 = vsel %vm1202, %v1197, 0
        %v1226 = vsel %vm1202, %v1199, 0
        %1228 = vmatpush.bf16.xpose.msra.mxu0 0
        %1229 = vmatpush.bf16.xpose.msra.mxu0 0
        %1230 = vmatpush.bf16.xpose.msra.mxu0 0
        %1231 = vmatpush.bf16.xpose.msra.mxu0 0
        %1232 = vmatpush.bf16.xpose.msra.mxu0 0
        %1233 = vmatpush.bf16.xpose.msra.mxu0 0
        %1234 = vmatpush.bf16.xpose.msra.mxu0 0
        %1235 = vmatpush.bf16.xpose.msra.mxu0 %v1226
        %1236 = vmatmul.bf16.gmra.mxu0 %v1223
        %v1237 = vpop.f32.mrf.mxu0
        %v1238 = vadd.f32 0.0, %v1237
        %v1239 = vpop.f32.mrf.mxu0
        %1240 = vdwg.mxu0
        %v1241 = vsel %vm1202, %v1219, -inf
        %1242 = vmax.xlane.f32.xlu0 %v1241
        %v1243 = vpop.xlane.xlu0 %1242
        %v1244 = vsel %vm1202, %v1238, -inf
        %1245 = vmax.xlane.f32.xlu0 %v1244
        %v1246 = vpop.xlane.xlu0 %1245
        %v1247 = vsub.f32 %v1219, %v1243
        %v1248 = vsub.f32 %v1238, %v1246
        %v1249 = vmul.f32 %v1247, 1.442695
        %v1250 = vpow.pop %v1249
        %v1251 = vmul.f32 %v1248, 1.442695
        %v1252 = vpow.pop %v1251
        %v1253 = vsel %vm1202, %v1250, 0.0
        %1254 = vadd.xlane.f32.xlu0 %v1253
        %v1255 = vpop.xlane.xlu0 %1254
        %v1256 = vsel %vm1202, %v1252, 0.0
        %1257 = vadd.xlane.f32.xlu0 %v1256
        %v1258 = vpop.xlane.xlu0 %1257
        %v1259 = vrcp.pop %v1255
        %v1260 = vrcp.pop %v1258
        %v1261 = vmul.f32 %v1250, %v1259
        %v1262 = vmul.f32 %v1252, %v1260
        %v1263 = vpack.c.bf16 %v1261, %v1261
        %v1264 = vpack.c.bf16 %v1262, %v1262
        %v1266 = vsel %vm1202, %v1263, 0
        %vm1268 = vcmask 1043456
        %v1270 = vsel %vm1268, %v1200, 0
        %1272 = vmatpush.bf16.msra.mxu0 0
        %1273 = vmatpush.bf16.msra.mxu0 0
        %1274 = vmatpush.bf16.msra.mxu0 0
        %1275 = vmatpush.bf16.msra.mxu0 0
        %1276 = vmatpush.bf16.msra.mxu0 0
        %1277 = vmatpush.bf16.msra.mxu0 0
        %1278 = vmatpush.bf16.msra.mxu0 0
        %1279 = vmatpush.bf16.msra.mxu0 %v1270
        %1280 = vmatmul.bf16.gmra.mxu0 %v1266
        %v1281 = vpop.f32.mrf.mxu0
        %v1282 = vadd.f32 0.0, %v1281
        %v1283 = vpop.f32.mrf.mxu0
        %1284 = vdwg.mxu0
        %v1286 = vsel %vm1202, %v1264, 0
        %v1289 = vsel %vm1268, %v1201, 0
        %1291 = vmatpush.bf16.msra.mxu0 0
        %1292 = vmatpush.bf16.msra.mxu0 0
        %1293 = vmatpush.bf16.msra.mxu0 0
        %1294 = vmatpush.bf16.msra.mxu0 0
        %1295 = vmatpush.bf16.msra.mxu0 0
        %1296 = vmatpush.bf16.msra.mxu0 0
        %1297 = vmatpush.bf16.msra.mxu0 0
        %1298 = vmatpush.bf16.msra.mxu0 %v1289
        %1299 = vmatmul.bf16.gmra.mxu0 %v1286
        %v1300 = vpop.f32.mrf.mxu0
        %v1301 = vadd.f32 0.0, %v1300
        %v1302 = vpop.f32.mrf.mxu0
        %1303 = vdwg.mxu0
        %v1305 = vunpack.c.l.b16 %v1196
        %v1306 = vpack.c.b16 %v1305, %v1305
        %1307 = vrot.lane.b32.xlu0 %v1306, 120
        %v1308 = vpop.permute.xlu0 %1307
        %v1310 = vunpack.c.l.b16 %v1198
        %v1311 = vpack.c.b16 %v1310, %v1310
        %1312 = vrot.lane.b32.xlu0 %v1311, 120
        %v1313 = vpop.permute.xlu0 %1312
        %v1315 = vsel %vm1202, %v1308, 0
        %v1318 = vsel %vm1202, %v1313, 0
        %1320 = vmatpush.bf16.xpose.msra.mxu0 0
        %1321 = vmatpush.bf16.xpose.msra.mxu0 0
        %1322 = vmatpush.bf16.xpose.msra.mxu0 0
        %1323 = vmatpush.bf16.xpose.msra.mxu0 0
        %1324 = vmatpush.bf16.xpose.msra.mxu0 0
        %1325 = vmatpush.bf16.xpose.msra.mxu0 0
        %1326 = vmatpush.bf16.xpose.msra.mxu0 0
        %1327 = vmatpush.bf16.xpose.msra.mxu0 %v1318
        %1328 = vmatmul.bf16.gmra.mxu0 %v1315
        %v1329 = vpop.f32.mrf.mxu0
        %v1330 = vadd.f32 0.0, %v1329
        %v1331 = vpop.f32.mrf.mxu0
        %1332 = vdwg.mxu0
        %v1334 = vunpack.c.l.b16 %v1197
        %v1335 = vpack.c.b16 %v1334, %v1334
        %1336 = vrot.lane.b32.xlu0 %v1335, 120
        %v1337 = vpop.permute.xlu0 %1336
        %v1339 = vunpack.c.l.b16 %v1199
        %v1340 = vpack.c.b16 %v1339, %v1339
        %1341 = vrot.lane.b32.xlu0 %v1340, 120
        %v1342 = vpop.permute.xlu0 %1341
        %v1344 = vsel %vm1202, %v1337, 0
        %v1347 = vsel %vm1202, %v1342, 0
        %1349 = vmatpush.bf16.xpose.msra.mxu0 0
        %1350 = vmatpush.bf16.xpose.msra.mxu0 0
        %1351 = vmatpush.bf16.xpose.msra.mxu0 0
        %1352 = vmatpush.bf16.xpose.msra.mxu0 0
        %1353 = vmatpush.bf16.xpose.msra.mxu0 0
        %1354 = vmatpush.bf16.xpose.msra.mxu0 0
        %1355 = vmatpush.bf16.xpose.msra.mxu0 0
        %1356 = vmatpush.bf16.xpose.msra.mxu0 %v1347
        %1357 = vmatmul.bf16.gmra.mxu0 %v1344
        %v1358 = vpop.f32.mrf.mxu0
        %v1359 = vadd.f32 0.0, %v1358
        %v1360 = vpop.f32.mrf.mxu0
        %1361 = vdwg.mxu0
        %v1362 = vsel %vm1202, %v1330, -inf
        %1363 = vmax.xlane.f32.xlu0 %v1362
        %v1364 = vpop.xlane.xlu0 %1363
        %v1365 = vsel %vm1202, %v1359, -inf
        %1366 = vmax.xlane.f32.xlu0 %v1365
        %v1367 = vpop.xlane.xlu0 %1366
        %v1368 = vsub.f32 %v1330, %v1364
        %v1369 = vsub.f32 %v1359, %v1367
        %v1370 = vmul.f32 %v1368, 1.442695
        %v1371 = vpow.pop %v1370
        %v1372 = vmul.f32 %v1369, 1.442695
        %v1373 = vpow.pop %v1372
        %v1374 = vsel %vm1202, %v1371, 0.0
        %1375 = vadd.xlane.f32.xlu0 %v1374
        %v1376 = vpop.xlane.xlu0 %1375
        %v1377 = vsel %vm1202, %v1373, 0.0
        %1378 = vadd.xlane.f32.xlu0 %v1377
        %v1379 = vpop.xlane.xlu0 %1378
        %v1380 = vrcp.pop %v1376
        %v1381 = vrcp.pop %v1379
        %v1382 = vmul.f32 %v1371, %v1380
        %v1383 = vmul.f32 %v1373, %v1381
        %v1384 = vpack.c.bf16 %v1382, %v1382
        %v1385 = vpack.c.bf16 %v1383, %v1383
        %v1387 = vunpack.c.l.b16 %v1200
        %v1388 = vpack.c.b16 %v1387, %v1387
        %1389 = vrot.lane.b32.xlu0 %v1388, 120
        %v1390 = vpop.permute.xlu0 %1389
        %v1392 = vsel %vm1202, %v1384, 0
        %v1395 = vsel %vm1268, %v1390, 0
        %1397 = vmatpush.bf16.msra.mxu0 0
        %1398 = vmatpush.bf16.msra.mxu0 0
        %1399 = vmatpush.bf16.msra.mxu0 0
        %1400 = vmatpush.bf16.msra.mxu0 0
        %1401 = vmatpush.bf16.msra.mxu0 0
        %1402 = vmatpush.bf16.msra.mxu0 0
        %1403 = vmatpush.bf16.msra.mxu0 0
        %1404 = vmatpush.bf16.msra.mxu0 %v1395
        %1405 = vmatmul.bf16.gmra.mxu0 %v1392
        %v1406 = vpop.f32.mrf.mxu0
        %v1407 = vadd.f32 0.0, %v1406
        %v1408 = vpop.f32.mrf.mxu0
        %1409 = vdwg.mxu0
        %v1411 = vunpack.c.l.b16 %v1201
        %v1412 = vpack.c.b16 %v1411, %v1411
        %1413 = vrot.lane.b32.xlu0 %v1412, 120
        %v1414 = vpop.permute.xlu0 %1413
        %v1416 = vsel %vm1202, %v1385, 0
        %v1419 = vsel %vm1268, %v1414, 0
        %1421 = vmatpush.bf16.msra.mxu0 0
        %1422 = vmatpush.bf16.msra.mxu0 0
        %1423 = vmatpush.bf16.msra.mxu0 0
        %1424 = vmatpush.bf16.msra.mxu0 0
        %1425 = vmatpush.bf16.msra.mxu0 0
        %1426 = vmatpush.bf16.msra.mxu0 0
        %1427 = vmatpush.bf16.msra.mxu0 0
        %1428 = vmatpush.bf16.msra.mxu0 %v1419
        %1429 = vmatmul.bf16.gmra.mxu0 %v1416
        %v1430 = vpop.f32.mrf.mxu0
        %v1431 = vadd.f32 0.0, %v1430
        %v1432 = vpop.f32.mrf.mxu0
        %1433 = vdwg.mxu0
        %1434 = vrot.lane.b32.xlu0 %v1306, 112
        %v1435 = vpop.permute.xlu0 %1434
        %1436 = vrot.lane.b32.xlu0 %v1311, 112
        %v1437 = vpop.permute.xlu0 %1436
        %v1439 = vsel %vm1202, %v1435, 0
        %v1442 = vsel %vm1202, %v1437, 0
        %1444 = vmatpush.bf16.xpose.msra.mxu0 0
        %1445 = vmatpush.bf16.xpose.msra.mxu0 0
        %1446 = vmatpush.bf16.xpose.msra.mxu0 0
        %1447 = vmatpush.bf16.xpose.msra.mxu0 0
        %1448 = vmatpush.bf16.xpose.msra.mxu0 0
        %1449 = vmatpush.bf16.xpose.msra.mxu0 0
        %1450 = vmatpush.bf16.xpose.msra.mxu0 0
        %1451 = vmatpush.bf16.xpose.msra.mxu0 %v1442
        %1452 = vmatmul.bf16.gmra.mxu0 %v1439
        %v1453 = vpop.f32.mrf.mxu0
        %v1454 = vadd.f32 0.0, %v1453
        %v1455 = vpop.f32.mrf.mxu0
        %1456 = vdwg.mxu0
        %1457 = vrot.lane.b32.xlu0 %v1335, 112
        %v1458 = vpop.permute.xlu0 %1457
        %1459 = vrot.lane.b32.xlu0 %v1340, 112
        %v1460 = vpop.permute.xlu0 %1459
        %v1462 = vsel %vm1202, %v1458, 0
        %v1465 = vsel %vm1202, %v1460, 0
        %1467 = vmatpush.bf16.xpose.msra.mxu0 0
        %1468 = vmatpush.bf16.xpose.msra.mxu0 0
        %1469 = vmatpush.bf16.xpose.msra.mxu0 0
        %1470 = vmatpush.bf16.xpose.msra.mxu0 0
        %1471 = vmatpush.bf16.xpose.msra.mxu0 0
        %1472 = vmatpush.bf16.xpose.msra.mxu0 0
        %1473 = vmatpush.bf16.xpose.msra.mxu0 0
        %1474 = vmatpush.bf16.xpose.msra.mxu0 %v1465
        %1475 = vmatmul.bf16.gmra.mxu0 %v1462
        %v1476 = vpop.f32.mrf.mxu0
        %v1477 = vadd.f32 0.0, %v1476
        %v1478 = vpop.f32.mrf.mxu0
        %1479 = vdwg.mxu0
        %v1480 = vsel %vm1202, %v1454, -inf
        %1481 = vmax.xlane.f32.xlu0 %v1480
        %v1482 = vpop.xlane.xlu0 %1481
        %v1483 = vsel %vm1202, %v1477, -inf
        %1484 = vmax.xlane.f32.xlu0 %v1483
        %v1485 = vpop.xlane.xlu0 %1484
        %v1486 = vsub.f32 %v1454, %v1482
        %v1487 = vsub.f32 %v1477, %v1485
        %v1488 = vmul.f32 %v1486, 1.442695
        %v1489 = vpow.pop %v1488
        %v1490 = vmul.f32 %v1487, 1.442695
        %v1491 = vpow.pop %v1490
        %v1492 = vsel %vm1202, %v1489, 0.0
        %1493 = vadd.xlane.f32.xlu0 %v1492
        %v1494 = vpop.xlane.xlu0 %1493
        %v1495 = vsel %vm1202, %v1491, 0.0
        %1496 = vadd.xlane.f32.xlu0 %v1495
        %v1497 = vpop.xlane.xlu0 %1496
        %v1498 = vrcp.pop %v1494
        %v1499 = vrcp.pop %v1497
        %v1500 = vmul.f32 %v1489, %v1498
        %v1501 = vmul.f32 %v1491, %v1499
        %v1502 = vpack.c.bf16 %v1500, %v1500
        %v1503 = vpack.c.bf16 %v1501, %v1501
        %1504 = vrot.lane.b32.xlu0 %v1388, 112
        %v1505 = vpop.permute.xlu0 %1504
        %v1507 = vsel %vm1202, %v1502, 0
        %v1510 = vsel %vm1268, %v1505, 0
        %1512 = vmatpush.bf16.msra.mxu0 0
        %1513 = vmatpush.bf16.msra.mxu0 0
        %1514 = vmatpush.bf16.msra.mxu0 0
        %1515 = vmatpush.bf16.msra.mxu0 0
        %1516 = vmatpush.bf16.msra.mxu0 0
        %1517 = vmatpush.bf16.msra.mxu0 0
        %1518 = vmatpush.bf16.msra.mxu0 0
        %1519 = vmatpush.bf16.msra.mxu0 %v1510
        %1520 = vmatmul.bf16.gmra.mxu0 %v1507
        %v1521 = vpop.f32.mrf.mxu0
        %v1522 = vadd.f32 0.0, %v1521
        %v1523 = vpop.f32.mrf.mxu0
        %1524 = vdwg.mxu0
        %1525 = vrot.lane.b32.xlu0 %v1412, 112
        %v1526 = vpop.permute.xlu0 %1525
        %v1528 = vsel %vm1202, %v1503, 0
        %v1531 = vsel %vm1268, %v1526, 0
        %1533 = vmatpush.bf16.msra.mxu0 0
        %1534 = vmatpush.bf16.msra.mxu0 0
        %1535 = vmatpush.bf16.msra.mxu0 0
        %1536 = vmatpush.bf16.msra.mxu0 0
        %1537 = vmatpush.bf16.msra.mxu0 0
        %1538 = vmatpush.bf16.msra.mxu0 0
        %1539 = vmatpush.bf16.msra.mxu0 0
        %1540 = vmatpush.bf16.msra.mxu0 %v1531
        %1541 = vmatmul.bf16.gmra.mxu0 %v1528
        %v1542 = vpop.f32.mrf.mxu0
        %v1543 = vadd.f32 0.0, %v1542
        %v1544 = vpop.f32.mrf.mxu0
        %1545 = vdwg.mxu0
        %1546 = vrot.lane.b32.xlu0 %v1306, 104
        %v1547 = vpop.permute.xlu0 %1546
        %1548 = vrot.lane.b32.xlu0 %v1311, 104
        %v1549 = vpop.permute.xlu0 %1548
        %v1551 = vsel %vm1202, %v1547, 0
        %v1554 = vsel %vm1202, %v1549, 0
        %1556 = vmatpush.bf16.xpose.msra.mxu0 0
        %1557 = vmatpush.bf16.xpose.msra.mxu0 0
        %1558 = vmatpush.bf16.xpose.msra.mxu0 0
        %1559 = vmatpush.bf16.xpose.msra.mxu0 0
        %1560 = vmatpush.bf16.xpose.msra.mxu0 0
        %1561 = vmatpush.bf16.xpose.msra.mxu0 0
        %1562 = vmatpush.bf16.xpose.msra.mxu0 0
        %1563 = vmatpush.bf16.xpose.msra.mxu0 %v1554
        %1564 = vmatmul.bf16.gmra.mxu0 %v1551
        %v1565 = vpop.f32.mrf.mxu0
        %v1566 = vadd.f32 0.0, %v1565
        %v1567 = vpop.f32.mrf.mxu0
        %1568 = vdwg.mxu0
        %1569 = vrot.lane.b32.xlu0 %v1335, 104
        %v1570 = vpop.permute.xlu0 %1569
        %1571 = vrot.lane.b32.xlu0 %v1340, 104
        %v1572 = vpop.permute.xlu0 %1571
        %v1574 = vsel %vm1202, %v1570, 0
        %v1577 = vsel %vm1202, %v1572, 0
        %1579 = vmatpush.bf16.xpose.msra.mxu0 0
        %1580 = vmatpush.bf16.xpose.msra.mxu0 0
        %1581 = vmatpush.bf16.xpose.msra.mxu0 0
        %1582 = vmatpush.bf16.xpose.msra.mxu0 0
        %1583 = vmatpush.bf16.xpose.msra.mxu0 0
        %1584 = vmatpush.bf16.xpose.msra.mxu0 0
        %1585 = vmatpush.bf16.xpose.msra.mxu0 0
        %1586 = vmatpush.bf16.xpose.msra.mxu0 %v1577
        %1587 = vmatmul.bf16.gmra.mxu0 %v1574
        %v1588 = vpop.f32.mrf.mxu0
        %v1589 = vadd.f32 0.0, %v1588
        %v1590 = vpop.f32.mrf.mxu0
        %1591 = vdwg.mxu0
        %v1592 = vsel %vm1202, %v1566, -inf
        %1593 = vmax.xlane.f32.xlu0 %v1592
        %v1594 = vpop.xlane.xlu0 %1593
        %v1595 = vsel %vm1202, %v1589, -inf
        %1596 = vmax.xlane.f32.xlu0 %v1595
        %v1597 = vpop.xlane.xlu0 %1596
        %v1598 = vsub.f32 %v1566, %v1594
        %v1599 = vsub.f32 %v1589, %v1597
        %v1600 = vmul.f32 %v1598, 1.442695
        %v1601 = vpow.pop %v1600
        %v1602 = vmul.f32 %v1599, 1.442695
        %v1603 = vpow.pop %v1602
        %v1604 = vsel %vm1202, %v1601, 0.0
        %1605 = vadd.xlane.f32.xlu0 %v1604
        %v1606 = vpop.xlane.xlu0 %1605
        %v1607 = vsel %vm1202, %v1603, 0.0
        %1608 = vadd.xlane.f32.xlu0 %v1607
        %v1609 = vpop.xlane.xlu0 %1608
        %v1610 = vrcp.pop %v1606
        %v1611 = vrcp.pop %v1609
        %v1612 = vmul.f32 %v1601, %v1610
        %v1613 = vmul.f32 %v1603, %v1611
        %v1614 = vpack.c.bf16 %v1612, %v1612
        %v1615 = vpack.c.bf16 %v1613, %v1613
        %1616 = vrot.lane.b32.xlu0 %v1388, 104
        %v1617 = vpop.permute.xlu0 %1616
        %v1619 = vsel %vm1202, %v1614, 0
        %v1622 = vsel %vm1268, %v1617, 0
        %1624 = vmatpush.bf16.msra.mxu0 0
        %1625 = vmatpush.bf16.msra.mxu0 0
        %1626 = vmatpush.bf16.msra.mxu0 0
        %1627 = vmatpush.bf16.msra.mxu0 0
        %1628 = vmatpush.bf16.msra.mxu0 0
        %1629 = vmatpush.bf16.msra.mxu0 0
        %1630 = vmatpush.bf16.msra.mxu0 0
        %1631 = vmatpush.bf16.msra.mxu0 %v1622
        %1632 = vmatmul.bf16.gmra.mxu0 %v1619
        %v1633 = vpop.f32.mrf.mxu0
        %v1634 = vadd.f32 0.0, %v1633
        %v1635 = vpop.f32.mrf.mxu0
        %1636 = vdwg.mxu0
        %1637 = vrot.lane.b32.xlu0 %v1412, 104
        %v1638 = vpop.permute.xlu0 %1637
        %v1640 = vsel %vm1202, %v1615, 0
        %v1643 = vsel %vm1268, %v1638, 0
        %1645 = vmatpush.bf16.msra.mxu0 0
        %1646 = vmatpush.bf16.msra.mxu0 0
        %1647 = vmatpush.bf16.msra.mxu0 0
        %1648 = vmatpush.bf16.msra.mxu0 0
        %1649 = vmatpush.bf16.msra.mxu0 0
        %1650 = vmatpush.bf16.msra.mxu0 0
        %1651 = vmatpush.bf16.msra.mxu0 0
        %1652 = vmatpush.bf16.msra.mxu0 %v1643
        %1653 = vmatmul.bf16.gmra.mxu0 %v1640
        %v1654 = vpop.f32.mrf.mxu0
        %v1655 = vadd.f32 0.0, %v1654
        %v1656 = vpop.f32.mrf.mxu0
        %1657 = vdwg.mxu0
        %1660 = vrot.lane.b32.xlu0 %v1407, 8
        %v1661 = vpop.permute.xlu0 %1660
        %1662 = vrot.lane.b32.xlu0 %v1431, 8
        %v1663 = vpop.permute.xlu0 %1662
        %1668 = vrot.lane.b32.xlu0 %v1522, 16
        %v1669 = vpop.permute.xlu0 %1668
        %1670 = vrot.lane.b32.xlu0 %v1543, 16
        %v1671 = vpop.permute.xlu0 %1670
        %1676 = vrot.lane.b32.xlu0 %v1634, 24
        %v1677 = vpop.permute.xlu0 %1676
        %1678 = vrot.lane.b32.xlu0 %v1655, 24
        %v1679 = vpop.permute.xlu0 %1678
        %v1682 = vsel %vm1202, %v1282, %v1661
        %v1683 = vsel %vm1202, %v1301, %v1663
        %vm1684 = vcmask 130048
        %v1685 = vsel %vm1684, %v1682, %v1669
        %v1686 = vsel %vm1684, %v1683, %v1671
        %vm1687 = vcmask 195584
        %v1688 = vsel %vm1687, %v1685, %v1677
        %v1689 = vsel %vm1687, %v1686, %v1679
        %v1690 = vpack.c.bf16 %v1689, %v1688
        %v1691 = vld [vmem:[%s834] sm:$0xf]
        %v1692 = vld [vmem:[%s834 + $0x4] sm:$0xf]
        %v1693 = vld [vmem:[%s834 + $0x8] sm:$0xf]
        %v1694 = vld [vmem:[%s834 + $0xc] sm:$0xf]
        %v1695 = vld [vmem:[%s993] sm:$0x1]
        %v1697 = vperm.slane %v1695, 0
        %v1703 = vunpack.c.l.b16 %v1691
        %v1704 = vunpack.c.l.b16 %v1692
        %v1705 = vunpack.c.l.b16 %v1693
        %v1706 = vunpack.c.l.b16 %v1694
        %v1707 = vpack.c.b16 %v1704, %v1703
        %v1708 = vpack.c.b16 %v1706, %v1705
        %v1712 = vsel %vm1026, %v1690, 0
        %1714 = vmatpush.bf16.msra.mxu0 0
        %1715 = vmatpush.bf16.msra.mxu0 0
        %1716 = vmatpush.bf16.msra.mxu0 0
        %1717 = vmatpush.bf16.msra.mxu0 0
        %1718 = vmatpush.bf16.msra.mxu0 0
        %1719 = vmatpush.bf16.msra.mxu0 0
        %1720 = vmatpush.bf16.msra.mxu0 %v1708
        %1721 = vmatpush.bf16.msra.mxu0 %v1707
        %1722 = vmatmul.bf16.gmra.mxu0 %v1712
        %v1723 = vpop.f32.mrf.mxu0
        %v1724 = vadd.f32 %v1697, %v1723
        %v1725 = vpop.f32.mrf.mxu0
        %v1726 = vadd.f32 %v1697, %v1725
        %1727 = vdwg.mxu0
        %v1728 = vadd.f32 %v1022, %v1724
        %v1729 = vadd.f32 %v1023, %v1726
        %v1730 = vld [vmem:[%s996] sm:$0x1]
        %v1731 = vld [vmem:[%s843] sm:$0x1]
        %v1732 = vsel %vm1026, %v1728, 0.0
        %1733 = vadd.xlane.f32.xlu0 %v1732
        %v1734 = vpop.xlane.xlu0 %1733
        %v1735 = vsel %vm1026, %v1729, 0.0
        %1736 = vadd.xlane.f32.xlu0 %v1735
        %v1737 = vpop.xlane.xlu0 %1736
        %v1738 = vmul.f32 %v1734, %v1039
        %v1739 = vmul.f32 %v1737, %v1039
        %v1740 = vsub.f32 %v1728, %v1738
        %v1741 = vsub.f32 %v1729, %v1739
        %v1742 = vmul.f32 %v1740, %v1740
        %v1743 = vmul.f32 %v1741, %v1741
        %v1744 = vsel %vm1026, %v1742, 0.0
        %1745 = vadd.xlane.f32.xlu0 %v1744
        %v1746 = vpop.xlane.xlu0 %1745
        %v1747 = vsel %vm1026, %v1743, 0.0
        %1748 = vadd.xlane.f32.xlu0 %v1747
        %v1749 = vpop.xlane.xlu0 %1748
        %v1750 = vmul.f32 %v1746, %v1039
        %v1751 = vmul.f32 %v1749, %v1039
        %v1752 = vadd.f32 %v1750, 1e-05
        %v1753 = vadd.f32 %v1751, 1e-05
        %v1754 = vrsqrt.pop %v1752
        %v1755 = vmul.f32 %v1754, %v1752
        %v1756 = vmul.f32 %v1755, %v1754
        %v1757 = vmul.f32 0.5, %v1756
        %v1758 = vsub.f32 1.5, %v1757
        %v1759 = vmul.f32 %v1754, %v1758
        %vm1760 = vweird.f32 %v1752
        %vm1761 = vweird.f32 %v1754
        %vm1762 = vmor %vm1760, %vm1761
        %v1763 = vsel %vm1762, %v1754, %v1759
        %v1764 = vrsqrt.pop %v1753
        %v1765 = vmul.f32 %v1764, %v1753
        %v1766 = vmul.f32 %v1765, %v1764
        %v1767 = vmul.f32 0.5, %v1766
        %v1768 = vsub.f32 1.5, %v1767
        %v1769 = vmul.f32 %v1764, %v1768
        %vm1770 = vweird.f32 %v1753
        %vm1771 = vweird.f32 %v1764
        %vm1772 = vmor %vm1770, %vm1771
        %v1773 = vsel %vm1772, %v1764, %v1769
        %v1774 = vmul.f32 %v1740, %v1763
        %v1775 = vmul.f32 %v1741, %v1773
        %v1777 = vperm.slane %v1730, 0
        %v1779 = vmul.f32 %v1774, %v1777
        %v1780 = vmul.f32 %v1775, %v1777
        %v1782 = vperm.slane %v1731, 0
        %v1784 = vadd.f32 %v1779, %v1782
        %v1785 = vadd.f32 %v1780, %v1782
        %v1786 = vpack.c.bf16 %v1785, %v1784
        %v1787 = vld [vmem:[%s853] sm:$0xf]
        %v1788 = vld [vmem:[%s853 + $0x4] sm:$0xf]
        %v1789 = vld [vmem:[%s853 + $0x8] sm:$0xf]
        %v1790 = vld [vmem:[%s853 + $0xc] sm:$0xf]
        %v1791 = vld [vmem:[%s999] sm:$0x1]
        %v1793 = vperm.slane %v1791, 0
        %v1799 = vunpack.c.l.b16 %v1787
        %v1800 = vunpack.c.l.b16 %v1788
        %v1801 = vunpack.c.l.b16 %v1789
        %v1802 = vunpack.c.l.b16 %v1790
        %v1803 = vpack.c.b16 %v1800, %v1799
        %v1804 = vpack.c.b16 %v1802, %v1801
        %v1808 = vsel %vm1026, %v1786, 0
        %1810 = vmatpush.bf16.msra.mxu0 0
        %1811 = vmatpush.bf16.msra.mxu0 0
        %1812 = vmatpush.bf16.msra.mxu0 0
        %1813 = vmatpush.bf16.msra.mxu0 0
        %1814 = vmatpush.bf16.msra.mxu0 0
        %1815 = vmatpush.bf16.msra.mxu0 0
        %1816 = vmatpush.bf16.msra.mxu0 %v1804
        %1817 = vmatpush.bf16.msra.mxu0 %v1803
        %1818 = vmatmul.bf16.gmra.mxu0 %v1808
        %v1819 = vpop.f32.mrf.mxu0
        %v1820 = vadd.f32 %v1793, %v1819
        %v1821 = vpop.f32.mrf.mxu0
        %v1822 = vadd.f32 %v1793, %v1821
        %1823 = vdwg.mxu0
        %v1824 = vmax.f32 %v1820, 0.0
        %v1825 = vmax.f32 %v1822, 0.0
        %v1826 = vpack.c.bf16 %v1825, %v1824
        %v1827 = vld [vmem:[%s1004] sm:$0xf]
        %v1828 = vld [vmem:[%s1004 + $0x4] sm:$0xf]
        %v1829 = vld [vmem:[%s1004 + $0x8] sm:$0xf]
        %v1830 = vld [vmem:[%s1004 + $0xc] sm:$0xf]
        %v1831 = vld [vmem:[%s1004 + $0x10] sm:$0xf]
        %v1832 = vld [vmem:[%s1004 + $0x14] sm:$0xf]
        %v1833 = vld [vmem:[%s1004 + $0x18] sm:$0xf]
        %v1834 = vld [vmem:[%s1004 + $0x1c] sm:$0xf]
        %v1835 = vld [vmem:[%s1007] sm:$0x1]
        %v1837 = vperm.slane %v1835, 0
        %v1847 = vunpack.c.l.b16 %v1827
        %v1848 = vunpack.c.l.b16 %v1828
        %v1849 = vunpack.c.l.b16 %v1829
        %v1850 = vunpack.c.l.b16 %v1830
        %v1851 = vunpack.c.l.b16 %v1831
        %v1852 = vunpack.c.l.b16 %v1832
        %v1853 = vunpack.c.l.b16 %v1833
        %v1854 = vunpack.c.l.b16 %v1834
        %v1855 = vpack.c.b16 %v1848, %v1847
        %v1856 = vpack.c.b16 %v1850, %v1849
        %v1857 = vpack.c.b16 %v1852, %v1851
        %v1858 = vpack.c.b16 %v1854, %v1853
        %vm1863 = vcmask 523264
        %v1865 = vsel %vm1863, %v1826, 0
        %1867 = vmatpush.bf16.msra.mxu0 0
        %1868 = vmatpush.bf16.msra.mxu0 0
        %1869 = vmatpush.bf16.msra.mxu0 0
        %1870 = vmatpush.bf16.msra.mxu0 0
        %1871 = vmatpush.bf16.msra.mxu0 %v1858
        %1872 = vmatpush.bf16.msra.mxu0 %v1857
        %1873 = vmatpush.bf16.msra.mxu0 %v1856
        %1874 = vmatpush.bf16.msra.mxu0 %v1855
        %1875 = vmatmul.bf16.gmra.mxu0 %v1865
        %v1876 = vpop.f32.mrf.mxu0
        %v1877 = vadd.f32 %v1837, %v1876
        %v1878 = vpop.f32.mrf.mxu0
        %v1879 = vadd.f32 %v1837, %v1878
        %1880 = vdwg.mxu0
        %v1881 = vadd.f32 %v1728, %v1877
        %v1882 = vadd.f32 %v1729, %v1879
        %1883 = vst.msk [vmem:[#allocation2] sm:$0xff] %vm1026, %v1881
        %1884 = vst.msk [vmem:[#allocation2 + $0x8] sm:$0xff] %vm1026, %v1882
        %p1885 = scmp.eq.s32.totalorder %s45, 1
        // Predicated region
        $region133: #{tpu_custom_call.1} parent=99 // pred_check
          %p1886 = pneg %p1885
        $region134: #{tpu_custom_call.1} parent=99 // pred_check_branch
          %1888 = sbr.rel (%p1886) target = $region136
        $region135: #{tpu_custom_call.1} parent=99 // pred_region
          %v1889 = vld [vmem:[%s2] sm:$0x1]
          %v1890 = vld [vmem:[#allocation8] sm:$0x1]
          %v1891 = vsel %vm1026, %v1881, 0.0
          %1892 = vadd.xlane.f32.xlu0 %v1891
          %v1893 = vpop.xlane.xlu0 %1892
          %v1894 = vsel %vm1026, %v1882, 0.0
          %1895 = vadd.xlane.f32.xlu0 %v1894
          %v1896 = vpop.xlane.xlu0 %1895
          %v1897 = vmul.f32 %v1893, %v1039
          %v1898 = vmul.f32 %v1896, %v1039
          %v1899 = vsub.f32 %v1881, %v1897
          %v1900 = vsub.f32 %v1882, %v1898
          %v1901 = vmul.f32 %v1899, %v1899
          %v1902 = vmul.f32 %v1900, %v1900
          %v1903 = vsel %vm1026, %v1901, 0.0
          %1904 = vadd.xlane.f32.xlu0 %v1903
          %v1905 = vpop.xlane.xlu0 %1904
          %v1906 = vsel %vm1026, %v1902, 0.0
          %1907 = vadd.xlane.f32.xlu0 %v1906
          %v1908 = vpop.xlane.xlu0 %1907
          %v1909 = vmul.f32 %v1905, %v1039
          %v1910 = vmul.f32 %v1908, %v1039
          %v1911 = vadd.f32 %v1909, 1e-05
          %v1912 = vadd.f32 %v1910, 1e-05
          %v1913 = vrsqrt.pop %v1911
          %v1914 = vmul.f32 %v1913, %v1911
          %v1915 = vmul.f32 %v1914, %v1913
          %v1916 = vmul.f32 0.5, %v1915
          %v1917 = vsub.f32 1.5, %v1916
          %v1918 = vmul.f32 %v1913, %v1917
          %vm1919 = vweird.f32 %v1911
          %vm1920 = vweird.f32 %v1913
          %vm1921 = vmor %vm1919, %vm1920
          %v1922 = vsel %vm1921, %v1913, %v1918
          %v1923 = vrsqrt.pop %v1912
          %v1924 = vmul.f32 %v1923, %v1912
          %v1925 = vmul.f32 %v1924, %v1923
          %v1926 = vmul.f32 0.5, %v1925
          %v1927 = vsub.f32 1.5, %v1926
          %v1928 = vmul.f32 %v1923, %v1927
          %vm1929 = vweird.f32 %v1912
          %vm1930 = vweird.f32 %v1923
          %vm1931 = vmor %vm1929, %vm1930
          %v1932 = vsel %vm1931, %v1923, %v1928
          %v1933 = vmul.f32 %v1899, %v1922
          %v1934 = vmul.f32 %v1900, %v1932
          %v1936 = vperm.slane %v1889, 0
          %v1938 = vmul.f32 %v1933, %v1936
          %v1939 = vmul.f32 %v1934, %v1936
          %v1941 = vperm.slane %v1890, 0
          %v1943 = vadd.f32 %v1938, %v1941
          %v1944 = vadd.f32 %v1939, %v1941
          %1945 = vst.msk [vmem:[#allocation15] sm:$0xff] %vm1026, %v1943
          %1946 = vst.msk [vmem:[#allocation15 + $0x8] sm:$0xff] %vm1026, %v1944
        $region136: #{tpu_custom_call.1} parent=99 // pred_fallthru
          _
        // Predicated region
        $region137: #{tpu_custom_call.1} parent=99 // pred_check
          %p1947 = pneg %p575
        $region138: #{tpu_custom_call.1} parent=99 // pred_check_branch
          %1949 = sbr.rel (%p1947) target = $region140
        $region139: #{tpu_custom_call.1} parent=99 // pred_region
          %s1950 = smul.u32 2, %s44
          %1952 = vsyncadd [#allocation5], 0
          %s1953 = smul.addr %s1950, 8
          %s1954 = scalar_lea.hbm %s20, %s1953
          %s1955 = sshll.u32 [#allocation15], 4
          %s1956 = int_to_ptr.vmem [resolvable:$true] %s1955
          %s1957 = sshll.u32 %s1954, 4
          %s1958 = int_to_ptr.hbm [resolvable:$true] %s1957
          %1963 = dma.vmem_to_hbm [thread:$0]  %s1956, 256, %s1958, [#allocation5], 128, 128, 8
        $region140: #{tpu_custom_call.1} parent=99 // pred_fallthru
          _
        // Predicated region
        $region141: #{tpu_custom_call.1} parent=99 // pred_check
          %p1964 = pneg %p575
        $region142: #{tpu_custom_call.1} parent=99 // pred_check_branch
          %1966 = sbr.rel (%p1964) target = $region144
        $region143: #{tpu_custom_call.1} parent=99 // pred_region
          %1968 = dma.done [#allocation5], 256
        $region144: #{tpu_custom_call.1} parent=99 // pred_fallthru
          _
      $region100: #{tpu_custom_call.1} parent=5 // pred_fallthru
        _
      %p1969 = scmp.le.s32.totalorder 2, %s35
      // Predicated region
      $region145: #{tpu_custom_call.1} parent=5 // pred_check
        %p1970 = pneg %p1969
      $region146: #{tpu_custom_call.1} parent=5 // pred_check_branch
        %1972 = sbr.rel (%p1970) target = $region148
      $region147: #{tpu_custom_call.1} parent=5 // pred_region
        %s1973 = ssub.s32 %s35, 2
      $region148: #{tpu_custom_call.1} parent=5 // pred_fallthru
        _
    $region6: #{tpu_custom_call.1} parent=1 // loop_footer
      %s39 = sadd.s32 1, %s35
    $region7: #{tpu_custom_call.1} parent=1 // loop_footer_branch
      %34 = sbr.rel target = $region3
    $region8: #{tpu_custom_call.1} parent=1 // loop_exit
      _
    %1974 = vsyncpa [#allocation4], 1
    %s1975 = scalar_lea.sflag [#allocation4], 1
    %1976 = vsyncpa %s1975, 1
    %1977 = vsyncpa [#allocation7], 1
    %1978 = vsyncpa [#allocation10], 1
    %s1979 = scalar_lea.sflag [#allocation10], 1
    %1980 = vsyncpa %s1979, 1
    %1981 = vsyncpa [#allocation13], 1
    %s1982 = scalar_lea.sflag [#allocation13], 1
    %1983 = vsyncpa %s1982, 1
    %1984 = vsyncpa [#allocation5], 1
    %s1985 = scalar_lea.sflag [#allocation5], 1
    %1986 = vsyncpa %s1985, 1

</llo_original>
